<compile_context>
chip_gen: v5e
topology: v5e:2x2
jax: 0.10.0
libtpu: 0.0.40
codegen_flags: <defaults>
</compile_context>

<pallas_src>
from functools import partial

import jax
import jax.numpy as jnp
from jax import lax
from jax.experimental import pallas as pl
from jax.experimental.pallas import tpu as pltpu


def attention_kernel(x_ref, wq_ref, wkv_ref, wproj_ref, bproj_ref, o_ref,
                     kv_ref, out_acc, *, num_heads, q_tile, heads_per_group):
    """One grid step = one (batch, query-tile).

    x_ref     : (1, N, C)   bf16   full sequence for this batch element
    wq_ref    : (C, C)      bf16   Q projection weight (softmax scale pre-folded)
    wkv_ref   : (C, 2C)     bf16   [K | V] projection weight
    wproj_ref : (C, C)      bf16   output projection weight
    bproj_ref : (1, C)      f32    output projection bias
    o_ref     : (1, TQ, C)         output tile
    kv_ref    : (N, 2C)     bf16   VMEM scratch, K/V for this batch element
    out_acc   : (TQ, C)     bf16   VMEM scratch, concatenated head outputs
    """
    N = x_ref.shape[1]
    C = x_ref.shape[2]
    hd = C // num_heads

    x_full = x_ref[0]                                                    # (N, C) bf16

    # ---- K/V projection: once per batch element (qi == 0), reused by all q-tiles
    @pl.when(pl.program_id(1) == 0)
    def _():
        kv_ref[...] = jnp.dot(
            x_full, wkv_ref[...], preferred_element_type=jnp.float32
        ).astype(jnp.bfloat16)                                           # (N, 2C) bf16

    # ---- Q projection for this query tile only (scale already folded into wq) ----
    if q_tile == N:
        x_q = x_full
    else:
        q_start = pl.multiple_of(pl.program_id(1) * q_tile, q_tile)
        x_q = x_ref[0, pl.ds(q_start, q_tile), :]                        # (TQ, C) bf16
    q_all = jnp.dot(x_q, wq_ref[...],
                    preferred_element_type=jnp.float32).astype(jnp.bfloat16)  # (TQ, C)

    # ---- per-head attention; heads grouped so each out_acc store is lane-dense ---
    # TODO(synk): for very large N (>= ~1024) this should become a flash-style KV
    #             loop with online softmax instead of materializing (TQ, N) scores.
    num_groups = num_heads // heads_per_group
    for g in range(num_groups):
        outs = []
        for hh in range(heads_per_group):
            h = g * heads_per_group + hh
            lo = h * hd
            q_h = q_all[:, lo:lo + hd]                                   # (TQ, hd) bf16
            k_h = kv_ref[:, lo:lo + hd]                                  # (N, hd)  bf16
            v_h = kv_ref[:, C + lo:C + lo + hd]                          # (N, hd)  bf16

            # q @ k^T without an explicit transpose (shared contracting dim on MXU)
            s = lax.dot_general(q_h, k_h, (((1,), (1,)), ((), ())),
                                preferred_element_type=jnp.float32)      # (TQ, N) f32

            # numerically stable softmax in f32; divide via EUP approx reciprocal
            s = s - jnp.max(s, axis=-1, keepdims=True)
            p = jnp.exp(s)
            inv = pl.reciprocal(jnp.sum(p, axis=-1, keepdims=True), approx=True)
            p = (p * inv).astype(jnp.bfloat16)

            outs.append(jnp.dot(p, v_h,
                                preferred_element_type=jnp.float32).astype(jnp.bfloat16))

        glo = g * heads_per_group * hd
        gw = heads_per_group * hd
        out_acc[:, glo:glo + gw] = (outs[0] if heads_per_group == 1
                                    else jnp.concatenate(outs, axis=-1))

    # ---- output projection + bias (single large K=C matmul) -----------------------
    y = jnp.dot(out_acc[...], wproj_ref[...],
                preferred_element_type=jnp.float32) + bproj_ref[...]
    o_ref[0] = y.astype(o_ref.dtype)

    # TODO(synk): attn_drop / proj_drop are identity in eval mode (p=0.0 default),
    # so dropout is intentionally not implemented.


def _pick_q_tile(N, max_tile=256):
    """Whole sequence if small; else the largest divisor preferring 128-multiples."""
    if N <= max_tile:
        return N
    for align in (128, 16, 8):
        start = max_tile - max_tile % align
        for t in range(start, align - 1, -align):
            if N % t == 0:
                return t
    return N  # no nice divisor -> single tile


def _heads_per_group(num_heads, hd, C):
    """Heads per out_acc store so the store width is 128-lane aligned (or full C)."""
    if C <= 128:
        g = num_heads
    elif hd % 128 == 0 or 128 % hd != 0:
        g = 1
    else:
        g = 128 // hd
    while num_heads % g:
        g -= 1
    return g


def attention(x, w_qkv, w_proj, b_proj, *, num_heads):
    B, N, C = x.shape
    assert C % num_heads == 0
    hd = C // num_heads
    scale = hd ** (-0.5)

    q_tile = _pick_q_tile(N)
    num_q_tiles = N // q_tile if N % q_tile == 0 else 1
    if num_q_tiles == 1:
        q_tile = N
    heads_per_group = _heads_per_group(num_heads, hd, C)

    # bf16 operands for the MXU (f32 accumulation happens inside the kernel).
    # Softmax scale folded into w_q on the host; bias stays f32.
    # TODO(synk): in a full model, pre-cast weights once and accept bf16 x from the
    #             producing layer instead of casting per call.
    x_bf = x.astype(jnp.bfloat16)
    w_q = (w_qkv[:, :C] * scale).astype(jnp.bfloat16)   # (C, C)
    w_kv = w_qkv[:, C:].astype(jnp.bfloat16)            # (C, 2C)  [K | V]
    w_proj_bf = w_proj.astype(jnp.bfloat16)             # (C, C)
    b_proj2d = b_proj.reshape(1, C).astype(jnp.float32)

    # ---- VMEM budget (explicit so v5e's 16 MiB default scoped limit is lifted and
    #      v7x's 64 MiB physical limit is respected) ---------------------------------
    bf, f4 = 2, 4
    est = (
        2 * N * C * bf                  # x block (double-buffered)
        + 2 * 4 * C * C * bf            # qkv + proj weights (worst case, 2 buffers)
        + 2 * C * f4                    # bias
        + 2 * q_tile * C * f4           # output block (double-buffered)
        + N * 2 * C * bf                # kv scratch
        + q_tile * C * bf               # out_acc scratch
        + q_tile * C * (f4 + bf)        # q_all f32 + bf16 copy
        + 2 * q_tile * N * f4           # score / prob tiles
        + q_tile * C * f4               # proj accumulation
    )
    vmem_limit = int(min(64 << 20, max(32 << 20, 2 * est)))

    kernel = partial(attention_kernel, num_heads=num_heads, q_tile=q_tile,
                     heads_per_group=heads_per_group)

    def make_in_specs(weight_pipeline_mode):
        wkw = ({} if weight_pipeline_mode is None
               else {"pipeline_mode": weight_pipeline_mode})
        return [
            pl.BlockSpec((1, N, C), lambda b, qi: (b, 0, 0)),
            pl.BlockSpec((C, C), lambda b, qi: (0, 0), **wkw),
            pl.BlockSpec((C, 2 * C), lambda b, qi: (0, 0), **wkw),
            pl.BlockSpec((C, C), lambda b, qi: (0, 0), **wkw),
            pl.BlockSpec((1, C), lambda b, qi: (0, 0), **wkw),
        ]

    def run(weight_pipeline_mode):
        return pl.pallas_call(
            kernel,
            out_shape=jax.ShapeDtypeStruct((B, N, C), x.dtype),
            grid=(B, num_q_tiles),
            in_specs=make_in_specs(weight_pipeline_mode),
            out_specs=pl.BlockSpec((1, q_tile, C), lambda b, qi: (b, qi, 0)),
            scratch_shapes=[pltpu.VMEM((N, 2 * C), jnp.bfloat16),
                            pltpu.VMEM((q_tile, C), jnp.bfloat16)],
            compiler_params=pltpu.CompilerParams(
                dimension_semantics=("parallel", "arbitrary"),
                vmem_limit_bytes=vmem_limit),
        )(x_bf, w_q, w_kv, w_proj_bf, b_proj2d)

    try:
        # Constant-index weights never change block -> single-buffer them to halve
        # their VMEM footprint.
        return run(pl.Buffered(1))
    except Exception:
        # TODO(synk): pl.Buffered(1) is a pure VMEM-headroom optimization; fall back
        # to default double buffering if this jax build rejects single-buffering.
        return run(None)


def attention_ref(x, w_qkv, w_proj, b_proj, *, num_heads):
    """Pure-JAX f32 reference mirroring the PyTorch forward."""
    B, N, C = x.shape
    hd = C // num_heads
    scale = hd ** (-0.5)
    qkv = (x @ w_qkv).reshape(B, N, 3, num_heads, hd).transpose(2, 0, 3, 1, 4)
    q, k, v = qkv[0], qkv[1], qkv[2]                    # (B, H, N, hd)
    attn = jnp.einsum("bhnd,bhmd->bhnm", q, k) * scale
    attn = jax.nn.softmax(attn, axis=-1)
    out = jnp.einsum("bhnm,bhmd->bhnd", attn, v)
    out = out.transpose(0, 2, 1, 3).reshape(B, N, C)
    return out @ w_proj + b_proj


if __name__ == "__main__":
    B, N, C = 2, 8, 32
    NUM_HEADS = 8

    key = jax.random.PRNGKey(0)
    kx, kq, kp, kb = jax.random.split(key, 4)

    x = jax.random.normal(kx, (B, N, C), dtype=jnp.float32)
    # deterministic synthetic parameters (qkv has no bias; proj has bias)
    w_qkv = 0.02 * jax.random.normal(kq, (C, 3 * C), dtype=jnp.float32)
    w_proj = 0.02 * jax.random.normal(kp, (C, C), dtype=jnp.float32)
    b_proj = 0.02 * jax.random.normal(kb, (C,), dtype=jnp.float32)

    out = attention(x, w_qkv, w_proj, b_proj, num_heads=NUM_HEADS)
    out = jax.block_until_ready(out)

    ref = attention_ref(x, w_qkv, w_proj, b_proj, num_heads=NUM_HEADS)
    assert out.shape == (B, N, C)
    # bf16 MXU inputs + approx reciprocal -> loosen tolerance vs. the f32 reference
    assert jnp.allclose(out, ref, atol=5e-3, rtol=5e-2), "mismatch vs reference"

    print("KERNEL_OK")
</pallas_src>

<mosaic_0001>
module attributes {stable_mosaic.version = 11 : i64} {
  func.func @attention_kernel(%arg0: i32, %arg1: i32, %arg2: memref<1x8x32xbf16, #tpu.memory_space<vmem>>, %arg3: memref<32x32xbf16, #tpu.memory_space<vmem>>, %arg4: memref<32x64xbf16, #tpu.memory_space<vmem>>, %arg5: memref<32x32xbf16, #tpu.memory_space<vmem>>, %arg6: memref<1x32xf32, #tpu.memory_space<vmem>>, %arg7: memref<1x8x32xf32, #tpu.memory_space<vmem>>, %arg8: memref<8x64xbf16, #tpu.memory_space<vmem>>, %arg9: memref<8x32xbf16, #tpu.memory_space<vmem>>) attributes {dimension_semantics = [#tpu.dimension_semantics<parallel>, #tpu.dimension_semantics<arbitrary>], iteration_bounds = array<i64: 2, 1>, scalar_prefetch = 0 : i64, scratch_operands = 2 : i64, tpu.core_type = #tpu.core_type<tc>, window_params = [{transform_indices = @transform_0, window_bounds = array<i64: 1, 8, 32>}, {pipeline_mode = #tpu.pipeline_mode<synchronous>, transform_indices = @transform_1, window_bounds = array<i64: 32, 32>}, {pipeline_mode = #tpu.pipeline_mode<synchronous>, transform_indices = @transform_2, window_bounds = array<i64: 32, 64>}, {pipeline_mode = #tpu.pipeline_mode<synchronous>, transform_indices = @transform_3, window_bounds = array<i64: 32, 32>}, {pipeline_mode = #tpu.pipeline_mode<synchronous>, transform_indices = @transform_4, window_bounds = array<i64: 1, 32>}, {transform_indices = @transform_5, window_bounds = array<i64: 1, 8, 32>}]} {
    %c0 = arith.constant 0 : index
    %c0_0 = arith.constant 0 : index
    %c0_1 = arith.constant 0 : index
    %0 = vector.load %arg2[%c0, %c0_0, %c0_1] : memref<1x8x32xbf16, #tpu.memory_space<vmem>>, vector<1x8x32xbf16>
    %1 = vector.shape_cast %0 : vector<1x8x32xbf16> to vector<8x32xbf16>
    %c0_i32 = arith.constant 0 : i32
    %2 = arith.cmpi eq, %arg1, %c0_i32 : i32
    %3 = arith.extui %2 : i1 to i32
    %c0_i32_2 = arith.constant 0 : i32
    %4 = arith.cmpi ne, %3, %c0_i32_2 : i32
    scf.if %4 {
      %c0_66 = arith.constant 0 : index
      %c0_67 = arith.constant 0 : index
      %155 = vector.load %arg4[%c0_66, %c0_67] : memref<32x64xbf16, #tpu.memory_space<vmem>>, vector<32x64xbf16>
      %cst_68 = arith.constant dense<0.000000e+00> : vector<8x64xf32>
      %156 = tpu.matmul %1, %155, %cst_68 {dimension_numbers = #tpu.dot_dimension_numbers<[1], [0], [0], [1], [0, 0, 1, 1], [], []>} : vector<8x32xbf16>, vector<32x64xbf16>, vector<8x64xf32> -> vector<8x64xf32>
      %157 = arith.truncf %156 : vector<8x64xf32> to vector<8x64xbf16>
      %c0_69 = arith.constant 0 : index
      %c0_70 = arith.constant 0 : index
      %158 = vector.load %arg8[%c0_69, %c0_70] : memref<8x64xbf16, #tpu.memory_space<vmem>>, vector<8x64xbf16>
      tpu.vector_store %arg8[%c0_69, %c0_70], %157 {strides = array<i32>} : memref<8x64xbf16, #tpu.memory_space<vmem>>, vector<8x64xbf16>,
    } else {
    }
    %c0_3 = arith.constant 0 : index
    %c0_4 = arith.constant 0 : index
    %5 = vector.load %arg3[%c0_3, %c0_4] : memref<32x32xbf16, #tpu.memory_space<vmem>>, vector<32x32xbf16>
    %cst = arith.constant dense<0.000000e+00> : vector<8x32xf32>
    %6 = tpu.matmul %1, %5, %cst {dimension_numbers = #tpu.dot_dimension_numbers<[1], [0], [0], [1], [0, 0, 1, 1], [], []>} : vector<8x32xbf16>, vector<32x32xbf16>, vector<8x32xf32> -> vector<8x32xf32>
    %7 = arith.truncf %6 : vector<8x32xf32> to vector<8x32xbf16>
    %8 = vector.extract_strided_slice %7 {offsets = [0, 0], sizes = [8, 4], strides = [1, 1]} : vector<8x32xbf16> to vector<8x4xbf16>
    %c0_5 = arith.constant 0 : index
    %c0_6 = arith.constant 0 : index
    %9 = vector.load %arg8[%c0_5, %c0_6] : memref<8x64xbf16, #tpu.memory_space<vmem>>, vector<8x4xbf16>
    %c0_7 = arith.constant 0 : index
    %c32 = arith.constant 32 : index
    %10 = vector.load %arg8[%c0_7, %c32] : memref<8x64xbf16, #tpu.memory_space<vmem>>, vector<8x4xbf16>
    %cst_8 = arith.constant dense<0.000000e+00> : vector<8x8xf32>
    %11 = tpu.matmul %8, %9, %cst_8 {dimension_numbers = #tpu.dot_dimension_numbers<[1], [1], [0], [0], [0, 0, 1, 0], [], []>} : vector<8x4xbf16>, vector<8x4xbf16>, vector<8x8xf32> -> vector<8x8xf32>
    %cst_9 = arith.constant dense<0xFF800000> : vector<8xf32>
    %12 = vector.multi_reduction <maximumf>, %11, %cst_9 [1] : vector<8x8xf32> to vector<8xf32>
    %13 = vector.shape_cast %12 : vector<8xf32> to vector<8x1xf32>
    %14 = vector.broadcast %13 : vector<8x1xf32> to vector<8x8xf32>
    %15 = arith.subf %11, %14 : vector<8x8xf32>
    %16 = math.exp %15 : vector<8x8xf32>
    %cst_10 = arith.constant dense<0.000000e+00> : vector<8xf32>
    %17 = vector.multi_reduction <add>, %16, %cst_10 [1] : vector<8x8xf32> to vector<8xf32>
    %18 = vector.shape_cast %17 : vector<8xf32> to vector<8x1xf32>
    %19 = tpu.reciprocal %18 {approx = true} : vector<8x1xf32> -> vector<8x1xf32>
    %20 = vector.broadcast %19 : vector<8x1xf32> to vector<8x8xf32>
    %21 = arith.mulf %16, %20 : vector<8x8xf32>
    %22 = arith.truncf %21 : vector<8x8xf32> to vector<8x8xbf16>
    %cst_11 = arith.constant dense<0.000000e+00> : vector<8x4xf32>
    %23 = tpu.matmul %22, %10, %cst_11 {dimension_numbers = #tpu.dot_dimension_numbers<[1], [0], [0], [1], [0, 0, 1, 1], [], []>} : vector<8x8xbf16>, vector<8x4xbf16>, vector<8x4xf32> -> vector<8x4xf32>
    %24 = arith.truncf %23 : vector<8x4xf32> to vector<8x4xbf16>
    %25 = vector.extract_strided_slice %7 {offsets = [0, 4], sizes = [8, 4], strides = [1, 1]} : vector<8x32xbf16> to vector<8x4xbf16>
    %c0_12 = arith.constant 0 : index
    %c4 = arith.constant 4 : index
    %26 = vector.load %arg8[%c0_12, %c4] : memref<8x64xbf16, #tpu.memory_space<vmem>>, vector<8x4xbf16>
    %c0_13 = arith.constant 0 : index
    %c36 = arith.constant 36 : index
    %27 = vector.load %arg8[%c0_13, %c36] : memref<8x64xbf16, #tpu.memory_space<vmem>>, vector<8x4xbf16>
    %cst_14 = arith.constant dense<0.000000e+00> : vector<8x8xf32>
    %28 = tpu.matmul %25, %26, %cst_14 {dimension_numbers = #tpu.dot_dimension_numbers<[1], [1], [0], [0], [0, 0, 1, 0], [], []>} : vector<8x4xbf16>, vector<8x4xbf16>, vector<8x8xf32> -> vector<8x8xf32>
    %cst_15 = arith.constant dense<0xFF800000> : vector<8xf32>
    %29 = vector.multi_reduction <maximumf>, %28, %cst_15 [1] : vector<8x8xf32> to vector<8xf32>
    %30 = vector.shape_cast %29 : vector<8xf32> to vector<8x1xf32>
    %31 = vector.broadcast %30 : vector<8x1xf32> to vector<8x8xf32>
    %32 = arith.subf %28, %31 : vector<8x8xf32>
    %33 = math.exp %32 : vector<8x8xf32>
    %cst_16 = arith.constant dense<0.000000e+00> : vector<8xf32>
    %34 = vector.multi_reduction <add>, %33, %cst_16 [1] : vector<8x8xf32> to vector<8xf32>
    %35 = vector.shape_cast %34 : vector<8xf32> to vector<8x1xf32>
    %36 = tpu.reciprocal %35 {approx = true} : vector<8x1xf32> -> vector<8x1xf32>
    %37 = vector.broadcast %36 : vector<8x1xf32> to vector<8x8xf32>
    %38 = arith.mulf %33, %37 : vector<8x8xf32>
    %39 = arith.truncf %38 : vector<8x8xf32> to vector<8x8xbf16>
    %cst_17 = arith.constant dense<0.000000e+00> : vector<8x4xf32>
    %40 = tpu.matmul %39, %27, %cst_17 {dimension_numbers = #tpu.dot_dimension_numbers<[1], [0], [0], [1], [0, 0, 1, 1], [], []>} : vector<8x8xbf16>, vector<8x4xbf16>, vector<8x4xf32> -> vector<8x4xf32>
    %41 = arith.truncf %40 : vector<8x4xf32> to vector<8x4xbf16>
    %42 = vector.extract_strided_slice %7 {offsets = [0, 8], sizes = [8, 4], strides = [1, 1]} : vector<8x32xbf16> to vector<8x4xbf16>
    %c0_18 = arith.constant 0 : index
    %c8 = arith.constant 8 : index
    %43 = vector.load %arg8[%c0_18, %c8] : memref<8x64xbf16, #tpu.memory_space<vmem>>, vector<8x4xbf16>
    %c0_19 = arith.constant 0 : index
    %c40 = arith.constant 40 : index
    %44 = vector.load %arg8[%c0_19, %c40] : memref<8x64xbf16, #tpu.memory_space<vmem>>, vector<8x4xbf16>
    %cst_20 = arith.constant dense<0.000000e+00> : vector<8x8xf32>
    %45 = tpu.matmul %42, %43, %cst_20 {dimension_numbers = #tpu.dot_dimension_numbers<[1], [1], [0], [0], [0, 0, 1, 0], [], []>} : vector<8x4xbf16>, vector<8x4xbf16>, vector<8x8xf32> -> vector<8x8xf32>
    %cst_21 = arith.constant dense<0xFF800000> : vector<8xf32>
    %46 = vector.multi_reduction <maximumf>, %45, %cst_21 [1] : vector<8x8xf32> to vector<8xf32>
    %47 = vector.shape_cast %46 : vector<8xf32> to vector<8x1xf32>
    %48 = vector.broadcast %47 : vector<8x1xf32> to vector<8x8xf32>
    %49 = arith.subf %45, %48 : vector<8x8xf32>
    %50 = math.exp %49 : vector<8x8xf32>
    %cst_22 = arith.constant dense<0.000000e+00> : vector<8xf32>
    %51 = vector.multi_reduction <add>, %50, %cst_22 [1] : vector<8x8xf32> to vector<8xf32>
    %52 = vector.shape_cast %51 : vector<8xf32> to vector<8x1xf32>
    %53 = tpu.reciprocal %52 {approx = true} : vector<8x1xf32> -> vector<8x1xf32>
    %54 = vector.broadcast %53 : vector<8x1xf32> to vector<8x8xf32>
    %55 = arith.mulf %50, %54 : vector<8x8xf32>
    %56 = arith.truncf %55 : vector<8x8xf32> to vector<8x8xbf16>
    %cst_23 = arith.constant dense<0.000000e+00> : vector<8x4xf32>
    %57 = tpu.matmul %56, %44, %cst_23 {dimension_numbers = #tpu.dot_dimension_numbers<[1], [0], [0], [1], [0, 0, 1, 1], [], []>} : vector<8x8xbf16>, vector<8x4xbf16>, vector<8x4xf32> -> vector<8x4xf32>
    %58 = arith.truncf %57 : vector<8x4xf32> to vector<8x4xbf16>
    %59 = vector.extract_strided_slice %7 {offsets = [0, 12], sizes = [8, 4], strides = [1, 1]} : vector<8x32xbf16> to vector<8x4xbf16>
    %c0_24 = arith.constant 0 : index
    %c12 = arith.constant 12 : index
    %60 = vector.load %arg8[%c0_24, %c12] : memref<8x64xbf16, #tpu.memory_space<vmem>>, vector<8x4xbf16>
    %c0_25 = arith.constant 0 : index
    %c44 = arith.constant 44 : index
    %61 = vector.load %arg8[%c0_25, %c44] : memref<8x64xbf16, #tpu.memory_space<vmem>>, vector<8x4xbf16>
    %cst_26 = arith.constant dense<0.000000e+00> : vector<8x8xf32>
    %62 = tpu.matmul %59, %60, %cst_26 {dimension_numbers = #tpu.dot_dimension_numbers<[1], [1], [0], [0], [0, 0, 1, 0], [], []>} : vector<8x4xbf16>, vector<8x4xbf16>, vector<8x8xf32> -> vector<8x8xf32>
    %cst_27 = arith.constant dense<0xFF800000> : vector<8xf32>
    %63 = vector.multi_reduction <maximumf>, %62, %cst_27 [1] : vector<8x8xf32> to vector<8xf32>
    %64 = vector.shape_cast %63 : vector<8xf32> to vector<8x1xf32>
    %65 = vector.broadcast %64 : vector<8x1xf32> to vector<8x8xf32>
    %66 = arith.subf %62, %65 : vector<8x8xf32>
    %67 = math.exp %66 : vector<8x8xf32>
    %cst_28 = arith.constant dense<0.000000e+00> : vector<8xf32>
    %68 = vector.multi_reduction <add>, %67, %cst_28 [1] : vector<8x8xf32> to vector<8xf32>
    %69 = vector.shape_cast %68 : vector<8xf32> to vector<8x1xf32>
    %70 = tpu.reciprocal %69 {approx = true} : vector<8x1xf32> -> vector<8x1xf32>
    %71 = vector.broadcast %70 : vector<8x1xf32> to vector<8x8xf32>
    %72 = arith.mulf %67, %71 : vector<8x8xf32>
    %73 = arith.truncf %72 : vector<8x8xf32> to vector<8x8xbf16>
    %cst_29 = arith.constant dense<0.000000e+00> : vector<8x4xf32>
    %74 = tpu.matmul %73, %61, %cst_29 {dimension_numbers = #tpu.dot_dimension_numbers<[1], [0], [0], [1], [0, 0, 1, 1], [], []>} : vector<8x8xbf16>, vector<8x4xbf16>, vector<8x4xf32> -> vector<8x4xf32>
    %75 = arith.truncf %74 : vector<8x4xf32> to vector<8x4xbf16>
    %76 = vector.extract_strided_slice %7 {offsets = [0, 16], sizes = [8, 4], strides = [1, 1]} : vector<8x32xbf16> to vector<8x4xbf16>
    %c0_30 = arith.constant 0 : index
    %c16 = arith.constant 16 : index
    %77 = vector.load %arg8[%c0_30, %c16] : memref<8x64xbf16, #tpu.memory_space<vmem>>, vector<8x4xbf16>
    %c0_31 = arith.constant 0 : index
    %c48 = arith.constant 48 : index
    %78 = vector.load %arg8[%c0_31, %c48] : memref<8x64xbf16, #tpu.memory_space<vmem>>, vector<8x4xbf16>
    %cst_32 = arith.constant dense<0.000000e+00> : vector<8x8xf32>
    %79 = tpu.matmul %76, %77, %cst_32 {dimension_numbers = #tpu.dot_dimension_numbers<[1], [1], [0], [0], [0, 0, 1, 0], [], []>} : vector<8x4xbf16>, vector<8x4xbf16>, vector<8x8xf32> -> vector<8x8xf32>
    %cst_33 = arith.constant dense<0xFF800000> : vector<8xf32>
    %80 = vector.multi_reduction <maximumf>, %79, %cst_33 [1] : vector<8x8xf32> to vector<8xf32>
    %81 = vector.shape_cast %80 : vector<8xf32> to vector<8x1xf32>
    %82 = vector.broadcast %81 : vector<8x1xf32> to vector<8x8xf32>
    %83 = arith.subf %79, %82 : vector<8x8xf32>
    %84 = math.exp %83 : vector<8x8xf32>
    %cst_34 = arith.constant dense<0.000000e+00> : vector<8xf32>
    %85 = vector.multi_reduction <add>, %84, %cst_34 [1] : vector<8x8xf32> to vector<8xf32>
    %86 = vector.shape_cast %85 : vector<8xf32> to vector<8x1xf32>
    %87 = tpu.reciprocal %86 {approx = true} : vector<8x1xf32> -> vector<8x1xf32>
    %88 = vector.broadcast %87 : vector<8x1xf32> to vector<8x8xf32>
    %89 = arith.mulf %84, %88 : vector<8x8xf32>
    %90 = arith.truncf %89 : vector<8x8xf32> to vector<8x8xbf16>
    %cst_35 = arith.constant dense<0.000000e+00> : vector<8x4xf32>
    %91 = tpu.matmul %90, %78, %cst_35 {dimension_numbers = #tpu.dot_dimension_numbers<[1], [0], [0], [1], [0, 0, 1, 1], [], []>} : vector<8x8xbf16>, vector<8x4xbf16>, vector<8x4xf32> -> vector<8x4xf32>
    %92 = arith.truncf %91 : vector<8x4xf32> to vector<8x4xbf16>
    %93 = vector.extract_strided_slice %7 {offsets = [0, 20], sizes = [8, 4], strides = [1, 1]} : vector<8x32xbf16> to vector<8x4xbf16>
    %c0_36 = arith.constant 0 : index
    %c20 = arith.constant 20 : index
    %94 = vector.load %arg8[%c0_36, %c20] : memref<8x64xbf16, #tpu.memory_space<vmem>>, vector<8x4xbf16>
    %c0_37 = arith.constant 0 : index
    %c52 = arith.constant 52 : index
    %95 = vector.load %arg8[%c0_37, %c52] : memref<8x64xbf16, #tpu.memory_space<vmem>>, vector<8x4xbf16>
    %cst_38 = arith.constant dense<0.000000e+00> : vector<8x8xf32>
    %96 = tpu.matmul %93, %94, %cst_38 {dimension_numbers = #tpu.dot_dimension_numbers<[1], [1], [0], [0], [0, 0, 1, 0], [], []>} : vector<8x4xbf16>, vector<8x4xbf16>, vector<8x8xf32> -> vector<8x8xf32>
    %cst_39 = arith.constant dense<0xFF800000> : vector<8xf32>
    %97 = vector.multi_reduction <maximumf>, %96, %cst_39 [1] : vector<8x8xf32> to vector<8xf32>
    %98 = vector.shape_cast %97 : vector<8xf32> to vector<8x1xf32>
    %99 = vector.broadcast %98 : vector<8x1xf32> to vector<8x8xf32>
    %100 = arith.subf %96, %99 : vector<8x8xf32>
    %101 = math.exp %100 : vector<8x8xf32>
    %cst_40 = arith.constant dense<0.000000e+00> : vector<8xf32>
    %102 = vector.multi_reduction <add>, %101, %cst_40 [1] : vector<8x8xf32> to vector<8xf32>
    %103 = vector.shape_cast %102 : vector<8xf32> to vector<8x1xf32>
    %104 = tpu.reciprocal %103 {approx = true} : vector<8x1xf32> -> vector<8x1xf32>
    %105 = vector.broadcast %104 : vector<8x1xf32> to vector<8x8xf32>
    %106 = arith.mulf %101, %105 : vector<8x8xf32>
    %107 = arith.truncf %106 : vector<8x8xf32> to vector<8x8xbf16>
    %cst_41 = arith.constant dense<0.000000e+00> : vector<8x4xf32>
    %108 = tpu.matmul %107, %95, %cst_41 {dimension_numbers = #tpu.dot_dimension_numbers<[1], [0], [0], [1], [0, 0, 1, 1], [], []>} : vector<8x8xbf16>, vector<8x4xbf16>, vector<8x4xf32> -> vector<8x4xf32>
    %109 = arith.truncf %108 : vector<8x4xf32> to vector<8x4xbf16>
    %110 = vector.extract_strided_slice %7 {offsets = [0, 24], sizes = [8, 4], strides = [1, 1]} : vector<8x32xbf16> to vector<8x4xbf16>
    %c0_42 = arith.constant 0 : index
    %c24 = arith.constant 24 : index
    %111 = vector.load %arg8[%c0_42, %c24] : memref<8x64xbf16, #tpu.memory_space<vmem>>, vector<8x4xbf16>
    %c0_43 = arith.constant 0 : index
    %c56 = arith.constant 56 : index
    %112 = vector.load %arg8[%c0_43, %c56] : memref<8x64xbf16, #tpu.memory_space<vmem>>, vector<8x4xbf16>
    %cst_44 = arith.constant dense<0.000000e+00> : vector<8x8xf32>
    %113 = tpu.matmul %110, %111, %cst_44 {dimension_numbers = #tpu.dot_dimension_numbers<[1], [1], [0], [0], [0, 0, 1, 0], [], []>} : vector<8x4xbf16>, vector<8x4xbf16>, vector<8x8xf32> -> vector<8x8xf32>
    %cst_45 = arith.constant dense<0xFF800000> : vector<8xf32>
    %114 = vector.multi_reduction <maximumf>, %113, %cst_45 [1] : vector<8x8xf32> to vector<8xf32>
    %115 = vector.shape_cast %114 : vector<8xf32> to vector<8x1xf32>
    %116 = vector.broadcast %115 : vector<8x1xf32> to vector<8x8xf32>
    %117 = arith.subf %113, %116 : vector<8x8xf32>
    %118 = math.exp %117 : vector<8x8xf32>
    %cst_46 = arith.constant dense<0.000000e+00> : vector<8xf32>
    %119 = vector.multi_reduction <add>, %118, %cst_46 [1] : vector<8x8xf32> to vector<8xf32>
    %120 = vector.shape_cast %119 : vector<8xf32> to vector<8x1xf32>
    %121 = tpu.reciprocal %120 {approx = true} : vector<8x1xf32> -> vector<8x1xf32>
    %122 = vector.broadcast %121 : vector<8x1xf32> to vector<8x8xf32>
    %123 = arith.mulf %118, %122 : vector<8x8xf32>
    %124 = arith.truncf %123 : vector<8x8xf32> to vector<8x8xbf16>
    %cst_47 = arith.constant dense<0.000000e+00> : vector<8x4xf32>
    %125 = tpu.matmul %124, %112, %cst_47 {dimension_numbers = #tpu.dot_dimension_numbers<[1], [0], [0], [1], [0, 0, 1, 1], [], []>} : vector<8x8xbf16>, vector<8x4xbf16>, vector<8x4xf32> -> vector<8x4xf32>
    %126 = arith.truncf %125 : vector<8x4xf32> to vector<8x4xbf16>
    %127 = vector.extract_strided_slice %7 {offsets = [0, 28], sizes = [8, 4], strides = [1, 1]} : vector<8x32xbf16> to vector<8x4xbf16>
    %c0_48 = arith.constant 0 : index
    %c28 = arith.constant 28 : index
    %128 = vector.load %arg8[%c0_48, %c28] : memref<8x64xbf16, #tpu.memory_space<vmem>>, vector<8x4xbf16>
    %c0_49 = arith.constant 0 : index
    %c60 = arith.constant 60 : index
    %129 = vector.load %arg8[%c0_49, %c60] : memref<8x64xbf16, #tpu.memory_space<vmem>>, vector<8x4xbf16>
    %cst_50 = arith.constant dense<0.000000e+00> : vector<8x8xf32>
    %130 = tpu.matmul %127, %128, %cst_50 {dimension_numbers = #tpu.dot_dimension_numbers<[1], [1], [0], [0], [0, 0, 1, 0], [], []>} : vector<8x4xbf16>, vector<8x4xbf16>, vector<8x8xf32> -> vector<8x8xf32>
    %cst_51 = arith.constant dense<0xFF800000> : vector<8xf32>
    %131 = vector.multi_reduction <maximumf>, %130, %cst_51 [1] : vector<8x8xf32> to vector<8xf32>
    %132 = vector.shape_cast %131 : vector<8xf32> to vector<8x1xf32>
    %133 = vector.broadcast %132 : vector<8x1xf32> to vector<8x8xf32>
    %134 = arith.subf %130, %133 : vector<8x8xf32>
    %135 = math.exp %134 : vector<8x8xf32>
    %cst_52 = arith.constant dense<0.000000e+00> : vector<8xf32>
    %136 = vector.multi_reduction <add>, %135, %cst_52 [1] : vector<8x8xf32> to vector<8xf32>
    %137 = vector.shape_cast %136 : vector<8xf32> to vector<8x1xf32>
    %138 = tpu.reciprocal %137 {approx = true} : vector<8x1xf32> -> vector<8x1xf32>
    %139 = vector.broadcast %138 : vector<8x1xf32> to vector<8x8xf32>
    %140 = arith.mulf %135, %139 : vector<8x8xf32>
    %141 = arith.truncf %140 : vector<8x8xf32> to vector<8x8xbf16>
    %cst_53 = arith.constant dense<0.000000e+00> : vector<8x4xf32>
    %142 = tpu.matmul %141, %129, %cst_53 {dimension_numbers = #tpu.dot_dimension_numbers<[1], [0], [0], [1], [0, 0, 1, 1], [], []>} : vector<8x8xbf16>, vector<8x4xbf16>, vector<8x4xf32> -> vector<8x4xf32>
    %143 = arith.truncf %142 : vector<8x4xf32> to vector<8x4xbf16>
    %144 = tpu.concatenate %24, %41, %58, %75, %92, %109, %126, %143 in 1 : vector<8x4xbf16>, vector<8x4xbf16>, vector<8x4xbf16>, vector<8x4xbf16>, vector<8x4xbf16>, vector<8x4xbf16>, vector<8x4xbf16>, vector<8x4xbf16> -> vector<8x32xbf16>
    %c0_54 = arith.constant 0 : index
    %c0_55 = arith.constant 0 : index
    %145 = vector.load %arg9[%c0_54, %c0_55] : memref<8x32xbf16, #tpu.memory_space<vmem>>, vector<8x32xbf16>
    tpu.vector_store %arg9[%c0_54, %c0_55], %144 {strides = array<i32>} : memref<8x32xbf16, #tpu.memory_space<vmem>>, vector<8x32xbf16>,
    %c0_56 = arith.constant 0 : index
    %c0_57 = arith.constant 0 : index
    %146 = vector.load %arg9[%c0_56, %c0_57] : memref<8x32xbf16, #tpu.memory_space<vmem>>, vector<8x32xbf16>
    %c0_58 = arith.constant 0 : index
    %c0_59 = arith.constant 0 : index
    %147 = vector.load %arg5[%c0_58, %c0_59] : memref<32x32xbf16, #tpu.memory_space<vmem>>, vector<32x32xbf16>
    %cst_60 = arith.constant dense<0.000000e+00> : vector<8x32xf32>
    %148 = tpu.matmul %146, %147, %cst_60 {dimension_numbers = #tpu.dot_dimension_numbers<[1], [0], [0], [1], [0, 0, 1, 1], [], []>} : vector<8x32xbf16>, vector<32x32xbf16>, vector<8x32xf32> -> vector<8x32xf32>
    %c0_61 = arith.constant 0 : index
    %c0_62 = arith.constant 0 : index
    %149 = vector.load %arg6[%c0_61, %c0_62] : memref<1x32xf32, #tpu.memory_space<vmem>>, vector<1x32xf32>
    %150 = vector.broadcast %149 : vector<1x32xf32> to vector<8x32xf32>
    %151 = arith.addf %148, %150 : vector<8x32xf32>
    %c0_63 = arith.constant 0 : index
    %c0_64 = arith.constant 0 : index
    %c0_65 = arith.constant 0 : index
    %152 = vector.load %arg7[%c0_63, %c0_64, %c0_65] : memref<1x8x32xf32, #tpu.memory_space<vmem>>, vector<1x8x32xf32>
    %153 = vector.shape_cast %152 : vector<1x8x32xf32> to vector<8x32xf32>
    %154 = vector.shape_cast %151 : vector<8x32xf32> to vector<1x8x32xf32>
    tpu.vector_store %arg7[%c0_63, %c0_64, %c0_65], %154 {strides = array<i32>} : memref<1x8x32xf32, #tpu.memory_space<vmem>>, vector<1x8x32xf32>,
    return
  }
  func.func @transform_0(%arg0: i32, %arg1: i32) -> (i32, i32, i32) {
    %c0_i32 = arith.constant 0 : i32
    %c0_i32_0 = arith.constant 0 : i32
    %c0_i32_1 = arith.constant 0 : i32
    return %arg0, %c0_i32, %c0_i32_0 : i32, i32, i32
  }
  func.func @transform_1(%arg0: i32, %arg1: i32) -> (i32, i32) {
    %c0_i32 = arith.constant 0 : i32
    %c0_i32_0 = arith.constant 0 : i32
    %c0_i32_1 = arith.constant 0 : i32
    return %c0_i32, %c0_i32_0 : i32, i32
  }
  func.func @transform_2(%arg0: i32, %arg1: i32) -> (i32, i32) {
    %c0_i32 = arith.constant 0 : i32
    %c0_i32_0 = arith.constant 0 : i32
    %c0_i32_1 = arith.constant 0 : i32
    return %c0_i32, %c0_i32_0 : i32, i32
  }
  func.func @transform_3(%arg0: i32, %arg1: i32) -> (i32, i32) {
    %c0_i32 = arith.constant 0 : i32
    %c0_i32_0 = arith.constant 0 : i32
    %c0_i32_1 = arith.constant 0 : i32
    return %c0_i32, %c0_i32_0 : i32, i32
  }
  func.func @transform_4(%arg0: i32, %arg1: i32) -> (i32, i32) {
    %c0_i32 = arith.constant 0 : i32
    %c0_i32_0 = arith.constant 0 : i32
    %c0_i32_1 = arith.constant 0 : i32
    return %c0_i32, %c0_i32_0 : i32, i32
  }
  func.func @transform_5(%arg0: i32, %arg1: i32) -> (i32, i32, i32) {
    %c0_i32 = arith.constant 0 : i32
    %c0_i32_0 = arith.constant 0 : i32
    return %arg0, %arg1, %c0_i32 : i32, i32, i32
  }
}

module attributes {stable_mosaic.version = 11 : i64} {
  func.func @attention_kernel(%arg0: i32, %arg1: i32, %arg2: memref<1x8x32xbf16, #tpu.memory_space<vmem>>, %arg3: memref<32x32xbf16, #tpu.memory_space<vmem>>, %arg4: memref<32x64xbf16, #tpu.memory_space<vmem>>, %arg5: memref<32x32xbf16, #tpu.memory_space<vmem>>, %arg6: memref<1x32xf32, #tpu.memory_space<vmem>>, %arg7: memref<1x8x32xf32, #tpu.memory_space<vmem>>, %arg8: memref<8x64xbf16, #tpu.memory_space<vmem>>, %arg9: memref<8x32xbf16, #tpu.memory_space<vmem>>) attributes {dimension_semantics = [#tpu.dimension_semantics<parallel>, #tpu.dimension_semantics<arbitrary>], iteration_bounds = array<i64: 2, 1>, scalar_prefetch = 0 : i64, scratch_operands = 2 : i64, tpu.core_type = #tpu.core_type<tc>, window_params = [{transform_indices = @transform_0, window_bounds = array<i64: 1, 8, 32>}, {pipeline_mode = #tpu.pipeline_mode<synchronous>, transform_indices = @transform_1, window_bounds = array<i64: 32, 32>}, {pipeline_mode = #tpu.pipeline_mode<synchronous>, transform_indices = @transform_2, window_bounds = array<i64: 32, 64>}, {pipeline_mode = #tpu.pipeline_mode<synchronous>, transform_indices = @transform_3, window_bounds = array<i64: 32, 32>}, {pipeline_mode = #tpu.pipeline_mode<synchronous>, transform_indices = @transform_4, window_bounds = array<i64: 1, 32>}, {transform_indices = @transform_5, window_bounds = array<i64: 1, 8, 32>}]} {
    %c0 = arith.constant 0 : index
    %c0_0 = arith.constant 0 : index
    %c0_1 = arith.constant 0 : index
    %0 = vector.load %arg2[%c0, %c0_0, %c0_1] : memref<1x8x32xbf16, #tpu.memory_space<vmem>>, vector<1x8x32xbf16>
    %1 = vector.shape_cast %0 : vector<1x8x32xbf16> to vector<8x32xbf16>
    %c0_i32 = arith.constant 0 : i32
    %2 = arith.cmpi eq, %arg1, %c0_i32 : i32
    %3 = arith.extui %2 : i1 to i32
    %c0_i32_2 = arith.constant 0 : i32
    %4 = arith.cmpi ne, %3, %c0_i32_2 : i32
    scf.if %4 {
      %c0_66 = arith.constant 0 : index
      %c0_67 = arith.constant 0 : index
      %155 = vector.load %arg4[%c0_66, %c0_67] : memref<32x64xbf16, #tpu.memory_space<vmem>>, vector<32x64xbf16>
      %cst_68 = arith.constant dense<0.000000e+00> : vector<8x64xf32>
      %156 = tpu.matmul %1, %155, %cst_68 {dimension_numbers = #tpu.dot_dimension_numbers<[1], [0], [0], [1], [0, 0, 1, 1], [], []>} : vector<8x32xbf16>, vector<32x64xbf16>, vector<8x64xf32> -> vector<8x64xf32>
      %157 = arith.truncf %156 : vector<8x64xf32> to vector<8x64xbf16>
      %c0_69 = arith.constant 0 : index
      %c0_70 = arith.constant 0 : index
      %158 = vector.load %arg8[%c0_69, %c0_70] : memref<8x64xbf16, #tpu.memory_space<vmem>>, vector<8x64xbf16>
      tpu.vector_store %arg8[%c0_69, %c0_70], %157 {strides = array<i32>} : memref<8x64xbf16, #tpu.memory_space<vmem>>, vector<8x64xbf16>,
    } else {
    }
    %c0_3 = arith.constant 0 : index
    %c0_4 = arith.constant 0 : index
    %5 = vector.load %arg3[%c0_3, %c0_4] : memref<32x32xbf16, #tpu.memory_space<vmem>>, vector<32x32xbf16>
    %cst = arith.constant dense<0.000000e+00> : vector<8x32xf32>
    %6 = tpu.matmul %1, %5, %cst {dimension_numbers = #tpu.dot_dimension_numbers<[1], [0], [0], [1], [0, 0, 1, 1], [], []>} : vector<8x32xbf16>, vector<32x32xbf16>, vector<8x32xf32> -> vector<8x32xf32>
    %7 = arith.truncf %6 : vector<8x32xf32> to vector<8x32xbf16>
    %8 = vector.extract_strided_slice %7 {offsets = [0, 0], sizes = [8, 4], strides = [1, 1]} : vector<8x32xbf16> to vector<8x4xbf16>
    %c0_5 = arith.constant 0 : index
    %c0_6 = arith.constant 0 : index
    %9 = vector.load %arg8[%c0_5, %c0_6] : memref<8x64xbf16, #tpu.memory_space<vmem>>, vector<8x4xbf16>
    %c0_7 = arith.constant 0 : index
    %c32 = arith.constant 32 : index
    %10 = vector.load %arg8[%c0_7, %c32] : memref<8x64xbf16, #tpu.memory_space<vmem>>, vector<8x4xbf16>
    %cst_8 = arith.constant dense<0.000000e+00> : vector<8x8xf32>
    %11 = tpu.matmul %8, %9, %cst_8 {dimension_numbers = #tpu.dot_dimension_numbers<[1], [1], [0], [0], [0, 0, 1, 0], [], []>} : vector<8x4xbf16>, vector<8x4xbf16>, vector<8x8xf32> -> vector<8x8xf32>
    %cst_9 = arith.constant dense<0xFF800000> : vector<8xf32>
    %12 = vector.multi_reduction <maximumf>, %11, %cst_9 [1] : vector<8x8xf32> to vector<8xf32>
    %13 = vector.shape_cast %12 : vector<8xf32> to vector<8x1xf32>
    %14 = vector.broadcast %13 : vector<8x1xf32> to vector<8x8xf32>
    %15 = arith.subf %11, %14 : vector<8x8xf32>
    %16 = math.exp %15 : vector<8x8xf32>
    %cst_10 = arith.constant dense<0.000000e+00> : vector<8xf32>
    %17 = vector.multi_reduction <add>, %16, %cst_10 [1] : vector<8x8xf32> to vector<8xf32>
    %18 = vector.shape_cast %17 : vector<8xf32> to vector<8x1xf32>
    %19 = tpu.reciprocal %18 {approx = true} : vector<8x1xf32> -> vector<8x1xf32>
    %20 = vector.broadcast %19 : vector<8x1xf32> to vector<8x8xf32>
    %21 = arith.mulf %16, %20 : vector<8x8xf32>
    %22 = arith.truncf %21 : vector<8x8xf32> to vector<8x8xbf16>
    %cst_11 = arith.constant dense<0.000000e+00> : vector<8x4xf32>
    %23 = tpu.matmul %22, %10, %cst_11 {dimension_numbers = #tpu.dot_dimension_numbers<[1], [0], [0], [1], [0, 0, 1, 1], [], []>} : vector<8x8xbf16>, vector<8x4xbf16>, vector<8x4xf32> -> vector<8x4xf32>
    %24 = arith.truncf %23 : vector<8x4xf32> to vector<8x4xbf16>
    %25 = vector.extract_strided_slice %7 {offsets = [0, 4], sizes = [8, 4], strides = [1, 1]} : vector<8x32xbf16> to vector<8x4xbf16>
    %c0_12 = arith.constant 0 : index
    %c4 = arith.constant 4 : index
    %26 = vector.load %arg8[%c0_12, %c4] : memref<8x64xbf16, #tpu.memory_space<vmem>>, vector<8x4xbf16>
    %c0_13 = arith.constant 0 : index
    %c36 = arith.constant 36 : index
    %27 = vector.load %arg8[%c0_13, %c36] : memref<8x64xbf16, #tpu.memory_space<vmem>>, vector<8x4xbf16>
    %cst_14 = arith.constant dense<0.000000e+00> : vector<8x8xf32>
    %28 = tpu.matmul %25, %26, %cst_14 {dimension_numbers = #tpu.dot_dimension_numbers<[1], [1], [0], [0], [0, 0, 1, 0], [], []>} : vector<8x4xbf16>, vector<8x4xbf16>, vector<8x8xf32> -> vector<8x8xf32>
    %cst_15 = arith.constant dense<0xFF800000> : vector<8xf32>
    %29 = vector.multi_reduction <maximumf>, %28, %cst_15 [1] : vector<8x8xf32> to vector<8xf32>
    %30 = vector.shape_cast %29 : vector<8xf32> to vector<8x1xf32>
    %31 = vector.broadcast %30 : vector<8x1xf32> to vector<8x8xf32>
    %32 = arith.subf %28, %31 : vector<8x8xf32>
    %33 = math.exp %32 : vector<8x8xf32>
    %cst_16 = arith.constant dense<0.000000e+00> : vector<8xf32>
    %34 = vector.multi_reduction <add>, %33, %cst_16 [1] : vector<8x8xf32> to vector<8xf32>
    %35 = vector.shape_cast %34 : vector<8xf32> to vector<8x1xf32>
    %36 = tpu.reciprocal %35 {approx = true} : vector<8x1xf32> -> vector<8x1xf32>
    %37 = vector.broadcast %36 : vector<8x1xf32> to vector<8x8xf32>
    %38 = arith.mulf %33, %37 : vector<8x8xf32>
    %39 = arith.truncf %38 : vector<8x8xf32> to vector<8x8xbf16>
    %cst_17 = arith.constant dense<0.000000e+00> : vector<8x4xf32>
    %40 = tpu.matmul %39, %27, %cst_17 {dimension_numbers = #tpu.dot_dimension_numbers<[1], [0], [0], [1], [0, 0, 1, 1], [], []>} : vector<8x8xbf16>, vector<8x4xbf16>, vector<8x4xf32> -> vector<8x4xf32>
    %41 = arith.truncf %40 : vector<8x4xf32> to vector<8x4xbf16>
    %42 = vector.extract_strided_slice %7 {offsets = [0, 8], sizes = [8, 4], strides = [1, 1]} : vector<8x32xbf16> to vector<8x4xbf16>
    %c0_18 = arith.constant 0 : index
    %c8 = arith.constant 8 : index
    %43 = vector.load %arg8[%c0_18, %c8] : memref<8x64xbf16, #tpu.memory_space<vmem>>, vector<8x4xbf16>
    %c0_19 = arith.constant 0 : index
    %c40 = arith.constant 40 : index
    %44 = vector.load %arg8[%c0_19, %c40] : memref<8x64xbf16, #tpu.memory_space<vmem>>, vector<8x4xbf16>
    %cst_20 = arith.constant dense<0.000000e+00> : vector<8x8xf32>
    %45 = tpu.matmul %42, %43, %cst_20 {dimension_numbers = #tpu.dot_dimension_numbers<[1], [1], [0], [0], [0, 0, 1, 0], [], []>} : vector<8x4xbf16>, vector<8x4xbf16>, vector<8x8xf32> -> vector<8x8xf32>
    %cst_21 = arith.constant dense<0xFF800000> : vector<8xf32>
    %46 = vector.multi_reduction <maximumf>, %45, %cst_21 [1] : vector<8x8xf32> to vector<8xf32>
    %47 = vector.shape_cast %46 : vector<8xf32> to vector<8x1xf32>
    %48 = vector.broadcast %47 : vector<8x1xf32> to vector<8x8xf32>
    %49 = arith.subf %45, %48 : vector<8x8xf32>
    %50 = math.exp %49 : vector<8x8xf32>
    %cst_22 = arith.constant dense<0.000000e+00> : vector<8xf32>
    %51 = vector.multi_reduction <add>, %50, %cst_22 [1] : vector<8x8xf32> to vector<8xf32>
    %52 = vector.shape_cast %51 : vector<8xf32> to vector<8x1xf32>
    %53 = tpu.reciprocal %52 {approx = true} : vector<8x1xf32> -> vector<8x1xf32>
    %54 = vector.broadcast %53 : vector<8x1xf32> to vector<8x8xf32>
    %55 = arith.mulf %50, %54 : vector<8x8xf32>
    %56 = arith.truncf %55 : vector<8x8xf32> to vector<8x8xbf16>
    %cst_23 = arith.constant dense<0.000000e+00> : vector<8x4xf32>
    %57 = tpu.matmul %56, %44, %cst_23 {dimension_numbers = #tpu.dot_dimension_numbers<[1], [0], [0], [1], [0, 0, 1, 1], [], []>} : vector<8x8xbf16>, vector<8x4xbf16>, vector<8x4xf32> -> vector<8x4xf32>
    %58 = arith.truncf %57 : vector<8x4xf32> to vector<8x4xbf16>
    %59 = vector.extract_strided_slice %7 {offsets = [0, 12], sizes = [8, 4], strides = [1, 1]} : vector<8x32xbf16> to vector<8x4xbf16>
    %c0_24 = arith.constant 0 : index
    %c12 = arith.constant 12 : index
    %60 = vector.load %arg8[%c0_24, %c12] : memref<8x64xbf16, #tpu.memory_space<vmem>>, vector<8x4xbf16>
    %c0_25 = arith.constant 0 : index
    %c44 = arith.constant 44 : index
    %61 = vector.load %arg8[%c0_25, %c44] : memref<8x64xbf16, #tpu.memory_space<vmem>>, vector<8x4xbf16>
    %cst_26 = arith.constant dense<0.000000e+00> : vector<8x8xf32>
    %62 = tpu.matmul %59, %60, %cst_26 {dimension_numbers = #tpu.dot_dimension_numbers<[1], [1], [0], [0], [0, 0, 1, 0], [], []>} : vector<8x4xbf16>, vector<8x4xbf16>, vector<8x8xf32> -> vector<8x8xf32>
    %cst_27 = arith.constant dense<0xFF800000> : vector<8xf32>
    %63 = vector.multi_reduction <maximumf>, %62, %cst_27 [1] : vector<8x8xf32> to vector<8xf32>
    %64 = vector.shape_cast %63 : vector<8xf32> to vector<8x1xf32>
    %65 = vector.broadcast %64 : vector<8x1xf32> to vector<8x8xf32>
    %66 = arith.subf %62, %65 : vector<8x8xf32>
    %67 = math.exp %66 : vector<8x8xf32>
    %cst_28 = arith.constant dense<0.000000e+00> : vector<8xf32>
    %68 = vector.multi_reduction <add>, %67, %cst_28 [1] : vector<8x8xf32> to vector<8xf32>
    %69 = vector.shape_cast %68 : vector<8xf32> to vector<8x1xf32>
    %70 = tpu.reciprocal %69 {approx = true} : vector<8x1xf32> -> vector<8x1xf32>
    %71 = vector.broadcast %70 : vector<8x1xf32> to vector<8x8xf32>
    %72 = arith.mulf %67, %71 : vector<8x8xf32>
    %73 = arith.truncf %72 : vector<8x8xf32> to vector<8x8xbf16>
    %cst_29 = arith.constant dense<0.000000e+00> : vector<8x4xf32>
    %74 = tpu.matmul %73, %61, %cst_29 {dimension_numbers = #tpu.dot_dimension_numbers<[1], [0], [0], [1], [0, 0, 1, 1], [], []>} : vector<8x8xbf16>, vector<8x4xbf16>, vector<8x4xf32> -> vector<8x4xf32>
    %75 = arith.truncf %74 : vector<8x4xf32> to vector<8x4xbf16>
    %76 = vector.extract_strided_slice %7 {offsets = [0, 16], sizes = [8, 4], strides = [1, 1]} : vector<8x32xbf16> to vector<8x4xbf16>
    %c0_30 = arith.constant 0 : index
    %c16 = arith.constant 16 : index
    %77 = vector.load %arg8[%c0_30, %c16] : memref<8x64xbf16, #tpu.memory_space<vmem>>, vector<8x4xbf16>
    %c0_31 = arith.constant 0 : index
    %c48 = arith.constant 48 : index
    %78 = vector.load %arg8[%c0_31, %c48] : memref<8x64xbf16, #tpu.memory_space<vmem>>, vector<8x4xbf16>
    %cst_32 = arith.constant dense<0.000000e+00> : vector<8x8xf32>
    %79 = tpu.matmul %76, %77, %cst_32 {dimension_numbers = #tpu.dot_dimension_numbers<[1], [1], [0], [0], [0, 0, 1, 0], [], []>} : vector<8x4xbf16>, vector<8x4xbf16>, vector<8x8xf32> -> vector<8x8xf32>
    %cst_33 = arith.constant dense<0xFF800000> : vector<8xf32>
    %80 = vector.multi_reduction <maximumf>, %79, %cst_33 [1] : vector<8x8xf32> to vector<8xf32>
    %81 = vector.shape_cast %80 : vector<8xf32> to vector<8x1xf32>
    %82 = vector.broadcast %81 : vector<8x1xf32> to vector<8x8xf32>
    %83 = arith.subf %79, %82 : vector<8x8xf32>
    %84 = math.exp %83 : vector<8x8xf32>
    %cst_34 = arith.constant dense<0.000000e+00> : vector<8xf32>
    %85 = vector.multi_reduction <add>, %84, %cst_34 [1] : vector<8x8xf32> to vector<8xf32>
    %86 = vector.shape_cast %85 : vector<8xf32> to vector<8x1xf32>
    %87 = tpu.reciprocal %86 {approx = true} : vector<8x1xf32> -> vector<8x1xf32>
    %88 = vector.broadcast %87 : vector<8x1xf32> to vector<8x8xf32>
    %89 = arith.mulf %84, %88 : vector<8x8xf32>
    %90 = arith.truncf %89 : vector<8x8xf32> to vector<8x8xbf16>
    %cst_35 = arith.constant dense<0.000000e+00> : vector<8x4xf32>
    %91 = tpu.matmul %90, %78, %cst_35 {dimension_numbers = #tpu.dot_dimension_numbers<[1], [0], [0], [1], [0, 0, 1, 1], [], []>} : vector<8x8xbf16>, vector<8x4xbf16>, vector<8x4xf32> -> vector<8x4xf32>
    %92 = arith.truncf %91 : vector<8x4xf32> to vector<8x4xbf16>
    %93 = vector.extract_strided_slice %7 {offsets = [0, 20], sizes = [8, 4], strides = [1, 1]} : vector<8x32xbf16> to vector<8x4xbf16>
    %c0_36 = arith.constant 0 : index
    %c20 = arith.constant 20 : index
    %94 = vector.load %arg8[%c0_36, %c20] : memref<8x64xbf16, #tpu.memory_space<vmem>>, vector<8x4xbf16>
    %c0_37 = arith.constant 0 : index
    %c52 = arith.constant 52 : index
    %95 = vector.load %arg8[%c0_37, %c52] : memref<8x64xbf16, #tpu.memory_space<vmem>>, vector<8x4xbf16>
    %cst_38 = arith.constant dense<0.000000e+00> : vector<8x8xf32>
    %96 = tpu.matmul %93, %94, %cst_38 {dimension_numbers = #tpu.dot_dimension_numbers<[1], [1], [0], [0], [0, 0, 1, 0], [], []>} : vector<8x4xbf16>, vector<8x4xbf16>, vector<8x8xf32> -> vector<8x8xf32>
    %cst_39 = arith.constant dense<0xFF800000> : vector<8xf32>
    %97 = vector.multi_reduction <maximumf>, %96, %cst_39 [1] : vector<8x8xf32> to vector<8xf32>
    %98 = vector.shape_cast %97 : vector<8xf32> to vector<8x1xf32>
    %99 = vector.broadcast %98 : vector<8x1xf32> to vector<8x8xf32>
    %100 = arith.subf %96, %99 : vector<8x8xf32>
    %101 = math.exp %100 : vector<8x8xf32>
    %cst_40 = arith.constant dense<0.000000e+00> : vector<8xf32>
    %102 = vector.multi_reduction <add>, %101, %cst_40 [1] : vector<8x8xf32> to vector<8xf32>
    %103 = vector.shape_cast %102 : vector<8xf32> to vector<8x1xf32>
    %104 = tpu.reciprocal %103 {approx = true} : vector<8x1xf32> -> vector<8x1xf32>
    %105 = vector.broadcast %104 : vector<8x1xf32> to vector<8x8xf32>
    %106 = arith.mulf %101, %105 : vector<8x8xf32>
    %107 = arith.truncf %106 : vector<8x8xf32> to vector<8x8xbf16>
    %cst_41 = arith.constant dense<0.000000e+00> : vector<8x4xf32>
    %108 = tpu.matmul %107, %95, %cst_41 {dimension_numbers = #tpu.dot_dimension_numbers<[1], [0], [0], [1], [0, 0, 1, 1], [], []>} : vector<8x8xbf16>, vector<8x4xbf16>, vector<8x4xf32> -> vector<8x4xf32>
    %109 = arith.truncf %108 : vector<8x4xf32> to vector<8x4xbf16>
    %110 = vector.extract_strided_slice %7 {offsets = [0, 24], sizes = [8, 4], strides = [1, 1]} : vector<8x32xbf16> to vector<8x4xbf16>
    %c0_42 = arith.constant 0 : index
    %c24 = arith.constant 24 : index
    %111 = vector.load %arg8[%c0_42, %c24] : memref<8x64xbf16, #tpu.memory_space<vmem>>, vector<8x4xbf16>
    %c0_43 = arith.constant 0 : index
    %c56 = arith.constant 56 : index
    %112 = vector.load %arg8[%c0_43, %c56] : memref<8x64xbf16, #tpu.memory_space<vmem>>, vector<8x4xbf16>
    %cst_44 = arith.constant dense<0.000000e+00> : vector<8x8xf32>
    %113 = tpu.matmul %110, %111, %cst_44 {dimension_numbers = #tpu.dot_dimension_numbers<[1], [1], [0], [0], [0, 0, 1, 0], [], []>} : vector<8x4xbf16>, vector<8x4xbf16>, vector<8x8xf32> -> vector<8x8xf32>
    %cst_45 = arith.constant dense<0xFF800000> : vector<8xf32>
    %114 = vector.multi_reduction <maximumf>, %113, %cst_45 [1] : vector<8x8xf32> to vector<8xf32>
    %115 = vector.shape_cast %114 : vector<8xf32> to vector<8x1xf32>
    %116 = vector.broadcast %115 : vector<8x1xf32> to vector<8x8xf32>
    %117 = arith.subf %113, %116 : vector<8x8xf32>
    %118 = math.exp %117 : vector<8x8xf32>
    %cst_46 = arith.constant dense<0.000000e+00> : vector<8xf32>
    %119 = vector.multi_reduction <add>, %118, %cst_46 [1] : vector<8x8xf32> to vector<8xf32>
    %120 = vector.shape_cast %119 : vector<8xf32> to vector<8x1xf32>
    %121 = tpu.reciprocal %120 {approx = true} : vector<8x1xf32> -> vector<8x1xf32>
    %122 = vector.broadcast %121 : vector<8x1xf32> to vector<8x8xf32>
    %123 = arith.mulf %118, %122 : vector<8x8xf32>
    %124 = arith.truncf %123 : vector<8x8xf32> to vector<8x8xbf16>
    %cst_47 = arith.constant dense<0.000000e+00> : vector<8x4xf32>
    %125 = tpu.matmul %124, %112, %cst_47 {dimension_numbers = #tpu.dot_dimension_numbers<[1], [0], [0], [1], [0, 0, 1, 1], [], []>} : vector<8x8xbf16>, vector<8x4xbf16>, vector<8x4xf32> -> vector<8x4xf32>
    %126 = arith.truncf %125 : vector<8x4xf32> to vector<8x4xbf16>
    %127 = vector.extract_strided_slice %7 {offsets = [0, 28], sizes = [8, 4], strides = [1, 1]} : vector<8x32xbf16> to vector<8x4xbf16>
    %c0_48 = arith.constant 0 : index
    %c28 = arith.constant 28 : index
    %128 = vector.load %arg8[%c0_48, %c28] : memref<8x64xbf16, #tpu.memory_space<vmem>>, vector<8x4xbf16>
    %c0_49 = arith.constant 0 : index
    %c60 = arith.constant 60 : index
    %129 = vector.load %arg8[%c0_49, %c60] : memref<8x64xbf16, #tpu.memory_space<vmem>>, vector<8x4xbf16>
    %cst_50 = arith.constant dense<0.000000e+00> : vector<8x8xf32>
    %130 = tpu.matmul %127, %128, %cst_50 {dimension_numbers = #tpu.dot_dimension_numbers<[1], [1], [0], [0], [0, 0, 1, 0], [], []>} : vector<8x4xbf16>, vector<8x4xbf16>, vector<8x8xf32> -> vector<8x8xf32>
    %cst_51 = arith.constant dense<0xFF800000> : vector<8xf32>
    %131 = vector.multi_reduction <maximumf>, %130, %cst_51 [1] : vector<8x8xf32> to vector<8xf32>
    %132 = vector.shape_cast %131 : vector<8xf32> to vector<8x1xf32>
    %133 = vector.broadcast %132 : vector<8x1xf32> to vector<8x8xf32>
    %134 = arith.subf %130, %133 : vector<8x8xf32>
    %135 = math.exp %134 : vector<8x8xf32>
    %cst_52 = arith.constant dense<0.000000e+00> : vector<8xf32>
    %136 = vector.multi_reduction <add>, %135, %cst_52 [1] : vector<8x8xf32> to vector<8xf32>
    %137 = vector.shape_cast %136 : vector<8xf32> to vector<8x1xf32>
    %138 = tpu.reciprocal %137 {approx = true} : vector<8x1xf32> -> vector<8x1xf32>
    %139 = vector.broadcast %138 : vector<8x1xf32> to vector<8x8xf32>
    %140 = arith.mulf %135, %139 : vector<8x8xf32>
    %141 = arith.truncf %140 : vector<8x8xf32> to vector<8x8xbf16>
    %cst_53 = arith.constant dense<0.000000e+00> : vector<8x4xf32>
    %142 = tpu.matmul %141, %129, %cst_53 {dimension_numbers = #tpu.dot_dimension_numbers<[1], [0], [0], [1], [0, 0, 1, 1], [], []>} : vector<8x8xbf16>, vector<8x4xbf16>, vector<8x4xf32> -> vector<8x4xf32>
    %143 = arith.truncf %142 : vector<8x4xf32> to vector<8x4xbf16>
    %144 = tpu.concatenate %24, %41, %58, %75, %92, %109, %126, %143 in 1 : vector<8x4xbf16>, vector<8x4xbf16>, vector<8x4xbf16>, vector<8x4xbf16>, vector<8x4xbf16>, vector<8x4xbf16>, vector<8x4xbf16>, vector<8x4xbf16> -> vector<8x32xbf16>
    %c0_54 = arith.constant 0 : index
    %c0_55 = arith.constant 0 : index
    %145 = vector.load %arg9[%c0_54, %c0_55] : memref<8x32xbf16, #tpu.memory_space<vmem>>, vector<8x32xbf16>
    tpu.vector_store %arg9[%c0_54, %c0_55], %144 {strides = array<i32>} : memref<8x32xbf16, #tpu.memory_space<vmem>>, vector<8x32xbf16>,
    %c0_56 = arith.constant 0 : index
    %c0_57 = arith.constant 0 : index
    %146 = vector.load %arg9[%c0_56, %c0_57] : memref<8x32xbf16, #tpu.memory_space<vmem>>, vector<8x32xbf16>
    %c0_58 = arith.constant 0 : index
    %c0_59 = arith.constant 0 : index
    %147 = vector.load %arg5[%c0_58, %c0_59] : memref<32x32xbf16, #tpu.memory_space<vmem>>, vector<32x32xbf16>
    %cst_60 = arith.constant dense<0.000000e+00> : vector<8x32xf32>
    %148 = tpu.matmul %146, %147, %cst_60 {dimension_numbers = #tpu.dot_dimension_numbers<[1], [0], [0], [1], [0, 0, 1, 1], [], []>} : vector<8x32xbf16>, vector<32x32xbf16>, vector<8x32xf32> -> vector<8x32xf32>
    %c0_61 = arith.constant 0 : index
    %c0_62 = arith.constant 0 : index
    %149 = vector.load %arg6[%c0_61, %c0_62] : memref<1x32xf32, #tpu.memory_space<vmem>>, vector<1x32xf32>
    %150 = vector.broadcast %149 : vector<1x32xf32> to vector<8x32xf32>
    %151 = arith.addf %148, %150 : vector<8x32xf32>
    %c0_63 = arith.constant 0 : index
    %c0_64 = arith.constant 0 : index
    %c0_65 = arith.constant 0 : index
    %152 = vector.load %arg7[%c0_63, %c0_64, %c0_65] : memref<1x8x32xf32, #tpu.memory_space<vmem>>, vector<1x8x32xf32>
    %153 = vector.shape_cast %152 : vector<1x8x32xf32> to vector<8x32xf32>
    %154 = vector.shape_cast %151 : vector<8x32xf32> to vector<1x8x32xf32>
    tpu.vector_store %arg7[%c0_63, %c0_64, %c0_65], %154 {strides = array<i32>} : memref<1x8x32xf32, #tpu.memory_space<vmem>>, vector<1x8x32xf32>,
    return
  }
  func.func @transform_0(%arg0: i32, %arg1: i32) -> (i32, i32, i32) {
    %c0_i32 = arith.constant 0 : i32
    %c0_i32_0 = arith.constant 0 : i32
    %c0_i32_1 = arith.constant 0 : i32
    return %arg0, %c0_i32, %c0_i32_0 : i32, i32, i32
  }
  func.func @transform_1(%arg0: i32, %arg1: i32) -> (i32, i32) {
    %c0_i32 = arith.constant 0 : i32
    %c0_i32_0 = arith.constant 0 : i32
    %c0_i32_1 = arith.constant 0 : i32
    return %c0_i32, %c0_i32_0 : i32, i32
  }
  func.func @transform_2(%arg0: i32, %arg1: i32) -> (i32, i32) {
    %c0_i32 = arith.constant 0 : i32
    %c0_i32_0 = arith.constant 0 : i32
    %c0_i32_1 = arith.constant 0 : i32
    return %c0_i32, %c0_i32_0 : i32, i32
  }
  func.func @transform_3(%arg0: i32, %arg1: i32) -> (i32, i32) {
    %c0_i32 = arith.constant 0 : i32
    %c0_i32_0 = arith.constant 0 : i32
    %c0_i32_1 = arith.constant 0 : i32
    return %c0_i32, %c0_i32_0 : i32, i32
  }
  func.func @transform_4(%arg0: i32, %arg1: i32) -> (i32, i32) {
    %c0_i32 = arith.constant 0 : i32
    %c0_i32_0 = arith.constant 0 : i32
    %c0_i32_1 = arith.constant 0 : i32
    return %c0_i32, %c0_i32_0 : i32, i32
  }
  func.func @transform_5(%arg0: i32, %arg1: i32) -> (i32, i32, i32) {
    %c0_i32 = arith.constant 0 : i32
    %c0_i32_0 = arith.constant 0 : i32
    return %arg0, %arg1, %c0_i32 : i32, i32, i32
  }
}

</mosaic_0001>

<llo_original>
// kernel: tpu_custom_call.1
$region0: #{tpu_custom_call.1}
  #allocation0 [shape = 'u32[]', space=smem, size = 0x4, offset = 0x4, fixed_abs, tag = 'smem constant byte address 0x4 - core index']
  #allocation1 [shape = 'u32[72,128]{1,0:T(1,128)}', space=vmem, size = 0x9000, scoped, tag = 'internal scratch']
  #allocation2 [shape = 'bf16[8,64]{1,0:T(8,128)(2,1)}', space=vmem, size = 0x800, scoped, tag = 'scratch operand']
  #allocation3 [shape = 'bf16[8,32]{1,0:T(8,128)(2,1)}', space=vmem, size = 0x800, scoped, tag = 'scratch operand']
  %s0 = inlined_call_operand.hbm [shape: bf16[2,8,32], index: 0, kind: input, shape index: {}]
  %s1 = inlined_call_operand.hbm [shape: bf16[32,32], index: 1, kind: input, shape index: {}]
  %s2 = inlined_call_operand.hbm [shape: bf16[32,64], index: 2, kind: input, shape index: {}]
  %s3 = inlined_call_operand.hbm [shape: bf16[32,32], index: 3, kind: input, shape index: {}]
  %s4 = inlined_call_operand.vmem [shape: f32[1,32], index: 4, kind: input, shape index: {}]
  %s5 = inlined_call_operand.hbm [shape: f32[2,8,32], index: 5, kind: output, shape index: {}]
  %s6 = sld [smem:[#allocation0]]
  $region73: #{tpu_custom_call.1} parent=0
    _
  %s8 = ssub.s32 1, %s6
  %s9 = scalar_select 0, %s8, %s6
  $region1: #{tpu_custom_call.1} parent=0
    #allocation4 [shape = 'u8[4096]{0}', space=vmem, size = 0x1000, scoped, tag = 'input window, operand 0']
    #allocation5 [shape = 's32[2]{0}', space=sflag, size = 0x8, scoped, tag = 'scoped memory for tpu_custom_call.1']
    #allocation6 [shape = 's32[2]{0}', space=sflag, size = 0x8, scoped, tag = 'scoped memory for tpu_custom_call.1']
    #allocation7 [shape = 'u8[8192]{0}', space=vmem, size = 0x2000, scoped, tag = 'input window, operand 1, single buffered']
    #allocation8 [shape = 's32[1]{0}', space=sflag, size = 0x4, scoped, tag = 'scoped memory for tpu_custom_call.1']
    #allocation9 [shape = 'u8[8192]{0}', space=vmem, size = 0x2000, scoped, tag = 'input window, operand 2, single buffered']
    #allocation10 [shape = 'u8[8192]{0}', space=vmem, size = 0x2000, scoped, tag = 'input window, operand 3, single buffered']
    #allocation11 [shape = 's32[1]{0}', space=sflag, size = 0x4, scoped, tag = 'scoped memory for tpu_custom_call.1']
    #allocation12 [shape = 'u8[8192]{0}', space=vmem, size = 0x2000, scoped, tag = 'output window, operand 0']
    %10 = vsyncpa [#allocation5], 0
    %s11 = scalar_lea.sflag [#allocation5], 1
    %12 = vsyncpa %s11, 0
    %13 = vsyncpa [#allocation8], 0
    %14 = vsyncpa [#allocation11], 0
    %15 = vsyncpa [#allocation6], 0
    %s16 = scalar_lea.sflag [#allocation6], 1
    %17 = vsyncpa %s16, 0
    loop: start=0, step=1, limit=4
    $region2: #{tpu_custom_call.1} parent=1 // loop_pre_header
      _
    $region3: #{tpu_custom_call.1} parent=1 // loop_header
      %s19 = sphi 0, %s23
      %p20 = scmp.ge.s32.totalorder %s19, 4
      %s26 = sphi 0, %s38
      %s27 = sphi 0, %s34
      %s28 = sphi 0, %s26
      %s29 = sphi 0, %s27
      %s30 = sphi 0, %s28
      %s31 = sphi 0, %s29
      %s41 = sphi 0, %s43
      %s44 = sphi 0, %s41
      %s45 = sphi 0, %s44
      %s61 = sphi 0, %s45
      %s65 = sphi 0, %s65
      %s67 = sphi 0, %s65
      %s68 = sphi 0, %s67
      %s82 = sphi 0, %s68
      %s86 = sphi 0, %s86
      %s88 = sphi 0, %s86
      %s89 = sphi 0, %s88
      %s103 = sphi 0, %s89
      %s107 = sphi 0, %s107
      %s109 = sphi 0, %s107
      %s110 = sphi 0, %s109
      %s124 = sphi 0, %s110
      %s128 = sphi 0, %s128
      %s130 = sphi 0, %s128
      %s131 = sphi 0, %s130
      %s145 = sphi 0, %s131
      %s153 = sphi 0, %s155
      %s156 = sphi 0, %s153
      %s157 = sphi 0, %s156
      %s173 = sphi 0, %s157
    $region4: #{tpu_custom_call.1} parent=1 // loop_header_branch
      %22 = sbr.rel (%p20) target = $region8
    $region5: #{tpu_custom_call.1} parent=1 // loop_body
      %s24 = ssub.s32 %s19, 1
      %s25 = ssub.s32 %s19, 2
      %s32 = sadd.s32 1, %s27
      %p33 = scmp.ge.s32.totalorder %s32, 1
      %s34 = scalar_select %p33, 0, %s32
      %s35 = sadd.s32 1, %s26
      %s36 = scalar_select %p33, %s35, %s26
      %p37 = scmp.ge.s32.totalorder %s36, 2
      %s38 = scalar_select %p37, 0, %s36
      %s39 = ssub.s32 %s26, %s38
      %p40 = scmp.eq.s32.totalorder %s39, 0
      %s42 = sadd.s32 %s41, 1
      %s43 = scalar_select %p40, %s41, %s42
      %p46 = pneg %p40
      %p47 = scmp.eq.s32.totalorder %s19, 1
      %p48 = por %p46, %p47
      %p49 = scmp.ne.s32.totalorder %s41, %s44
      %p50 = scmp.eq.s32.totalorder %s19, 0
      %p51 = por %p49, %p50
      %p52 = scmp.ne.s32.totalorder %s41, %s44
      %p53 = scmp.eq.s32.totalorder %s24, 1
      %p54 = por %p52, %p53
      %p55 = scmp.ne.s32.totalorder %s44, %s45
      %p56 = scmp.eq.s32.totalorder %s24, 0
      %p57 = por %p55, %p56
      %p58 = scmp.ne.s32.totalorder %s44, %s45
      %p59 = scmp.eq.s32.totalorder %s25, 1
      %p60 = por %p58, %p59
      %p62 = scmp.ne.s32.totalorder %s45, %s61
      %p63 = scmp.eq.s32.totalorder %s25, 0
      %p64 = por %p62, %p63
      %s66 = sadd.s32 %s65, 1
      %p69 = scmp.eq.s32.totalorder %s19, 1
      %p70 = scmp.ne.s32.totalorder %s65, %s67
      %p71 = scmp.eq.s32.totalorder %s19, 0
      %p72 = por %p70, %p71
      %p73 = scmp.ne.s32.totalorder %s65, %s67
      %p74 = scmp.eq.s32.totalorder %s24, 1
      %p75 = por %p73, %p74
      %p76 = scmp.ne.s32.totalorder %s67, %s68
      %p77 = scmp.eq.s32.totalorder %s24, 0
      %p78 = por %p76, %p77
      %p79 = scmp.ne.s32.totalorder %s67, %s68
      %p80 = scmp.eq.s32.totalorder %s25, 1
      %p81 = por %p79, %p80
      %p83 = scmp.ne.s32.totalorder %s68, %s82
      %p84 = scmp.eq.s32.totalorder %s25, 0
      %p85 = por %p83, %p84
      %s87 = sadd.s32 %s86, 1
      %p90 = scmp.eq.s32.totalorder %s19, 1
      %p91 = scmp.ne.s32.totalorder %s86, %s88
      %p92 = scmp.eq.s32.totalorder %s19, 0
      %p93 = por %p91, %p92
      %p94 = scmp.ne.s32.totalorder %s86, %s88
      %p95 = scmp.eq.s32.totalorder %s24, 1
      %p96 = por %p94, %p95
      %p97 = scmp.ne.s32.totalorder %s88, %s89
      %p98 = scmp.eq.s32.totalorder %s24, 0
      %p99 = por %p97, %p98
      %p100 = scmp.ne.s32.totalorder %s88, %s89
      %p101 = scmp.eq.s32.totalorder %s25, 1
      %p102 = por %p100, %p101
      %p104 = scmp.ne.s32.totalorder %s89, %s103
      %p105 = scmp.eq.s32.totalorder %s25, 0
      %p106 = por %p104, %p105
      %s108 = sadd.s32 %s107, 1
      %p111 = scmp.eq.s32.totalorder %s19, 1
      %p112 = scmp.ne.s32.totalorder %s107, %s109
      %p113 = scmp.eq.s32.totalorder %s19, 0
      %p114 = por %p112, %p113
      %p115 = scmp.ne.s32.totalorder %s107, %s109
      %p116 = scmp.eq.s32.totalorder %s24, 1
      %p117 = por %p115, %p116
      %p118 = scmp.ne.s32.totalorder %s109, %s110
      %p119 = scmp.eq.s32.totalorder %s24, 0
      %p120 = por %p118, %p119
      %p121 = scmp.ne.s32.totalorder %s109, %s110
      %p122 = scmp.eq.s32.totalorder %s25, 1
      %p123 = por %p121, %p122
      %p125 = scmp.ne.s32.totalorder %s110, %s124
      %p126 = scmp.eq.s32.totalorder %s25, 0
      %p127 = por %p125, %p126
      %s129 = sadd.s32 %s128, 1
      %p132 = scmp.eq.s32.totalorder %s19, 1
      %p133 = scmp.ne.s32.totalorder %s128, %s130
      %p134 = scmp.eq.s32.totalorder %s19, 0
      %p135 = por %p133, %p134
      %p136 = scmp.ne.s32.totalorder %s128, %s130
      %p137 = scmp.eq.s32.totalorder %s24, 1
      %p138 = por %p136, %p137
      %p139 = scmp.ne.s32.totalorder %s130, %s131
      %p140 = scmp.eq.s32.totalorder %s24, 0
      %p141 = por %p139, %p140
      %p142 = scmp.ne.s32.totalorder %s130, %s131
      %p143 = scmp.eq.s32.totalorder %s25, 1
      %p144 = por %p142, %p143
      %p146 = scmp.ne.s32.totalorder %s131, %s145
      %p147 = scmp.eq.s32.totalorder %s25, 0
      %p148 = por %p146, %p147
      %s149 = ssub.s32 %s26, %s38
      %s150 = ssub.s32 %s27, %s34
      %s151 = sor.u32 %s149, %s150
      %p152 = scmp.eq.s32.totalorder %s151, 0
      %s154 = sadd.s32 %s153, 1
      %s155 = scalar_select %p152, %s153, %s154
      %p158 = pneg %p152
      %p159 = scmp.eq.s32.totalorder %s19, 1
      %p160 = por %p158, %p159
      %p161 = scmp.ne.s32.totalorder %s153, %s156
      %p162 = scmp.eq.s32.totalorder %s19, 0
      %p163 = por %p161, %p162
      %p164 = scmp.ne.s32.totalorder %s153, %s156
      %p165 = scmp.eq.s32.totalorder %s24, 1
      %p166 = por %p164, %p165
      %p167 = scmp.ne.s32.totalorder %s156, %s157
      %p168 = scmp.eq.s32.totalorder %s24, 0
      %p169 = por %p167, %p168
      %p170 = scmp.ne.s32.totalorder %s156, %s157
      %p171 = scmp.eq.s32.totalorder %s25, 1
      %p172 = por %p170, %p171
      %p174 = scmp.ne.s32.totalorder %s157, %s173
      %p175 = scmp.eq.s32.totalorder %s25, 0
      %p176 = por %p174, %p175
      %p177 = scmp.le.s32.totalorder 1, %s19
      %p178 = scmp.lt.s32.totalorder %s19, 3
      %p179 = pnand %p177, %p178
      %p180 = pneg %p179
      // Predicated region
      $region9: #{tpu_custom_call.1} parent=5 // pred_check
        _
      $region10: #{tpu_custom_call.1} parent=5 // pred_check_branch
        %182 = sbr.rel (%p179) target = $region12
      $region11: #{tpu_custom_call.1} parent=5 // pred_region
        %s183 = ssub.s32 %s19, 1
        // Predicated region
        $region13: #{tpu_custom_call.1} parent=11 // pred_check
          %p184 = pneg %p78
        $region14: #{tpu_custom_call.1} parent=11 // pred_check_branch
          %186 = sbr.rel (%p184) target = $region16
        $region15: #{tpu_custom_call.1} parent=11 // pred_region
          %188 = vsyncadd [#allocation8], 0
          %s189 = sshll.u32 %s1, 4
          %s190 = int_to_ptr.hbm [resolvable:$true] %s189
          %s191 = sshll.u32 [#allocation7], 4
          %s192 = int_to_ptr.vmem [resolvable:$true] %s191
          %197 = dma.hbm_to_vmem [thread:$0]  %s190, 256, %s192, [#allocation8], 64, 64, 4
        $region16: #{tpu_custom_call.1} parent=11 // pred_fallthru
          _
        // Predicated region
        $region17: #{tpu_custom_call.1} parent=11 // pred_check
          %p198 = pneg %p99
        $region18: #{tpu_custom_call.1} parent=11 // pred_check_branch
          %200 = sbr.rel (%p198) target = $region20
        $region19: #{tpu_custom_call.1} parent=11 // pred_region
          %202 = vsyncadd [#allocation8], 0
          %s203 = sshll.u32 %s2, 4
          %s204 = int_to_ptr.hbm [resolvable:$true] %s203
          %s205 = sshll.u32 [#allocation9], 4
          %s206 = int_to_ptr.vmem [resolvable:$true] %s205
          %211 = dma.hbm_to_vmem [thread:$0]  %s204, 256, %s206, [#allocation8], 64, 64, 4
        $region20: #{tpu_custom_call.1} parent=11 // pred_fallthru
          _
        // Predicated region
        $region21: #{tpu_custom_call.1} parent=11 // pred_check
          %p212 = pneg %p120
        $region22: #{tpu_custom_call.1} parent=11 // pred_check_branch
          %214 = sbr.rel (%p212) target = $region24
        $region23: #{tpu_custom_call.1} parent=11 // pred_region
          %216 = vsyncadd [#allocation11], 0
          %s217 = sshll.u32 %s3, 4
          %s218 = int_to_ptr.hbm [resolvable:$true] %s217
          %s219 = sshll.u32 [#allocation10], 4
          %s220 = int_to_ptr.vmem [resolvable:$true] %s219
          %225 = dma.hbm_to_vmem [thread:$0]  %s218, 256, %s220, [#allocation11], 64, 64, 4
        $region24: #{tpu_custom_call.1} parent=11 // pred_fallthru
          _
        // Predicated region
        $region25: #{tpu_custom_call.1} parent=11 // pred_check
          %p226 = pneg %p141
        $region26: #{tpu_custom_call.1} parent=11 // pred_check_branch
          %228 = sbr.rel (%p226) target = $region28
        $region27: #{tpu_custom_call.1} parent=11 // pred_region
          _
        $region28: #{tpu_custom_call.1} parent=11 // pred_fallthru
          _
      $region12: #{tpu_custom_call.1} parent=5 // pred_fallthru
        _
      %p229 = scmp.lt.s32.totalorder %s19, 2
      // Predicated region
      $region29: #{tpu_custom_call.1} parent=5 // pred_check
        %p230 = pneg %p229
      $region30: #{tpu_custom_call.1} parent=5 // pred_check_branch
        %232 = sbr.rel (%p230) target = $region32
      $region31: #{tpu_custom_call.1} parent=5 // pred_region
        // Predicated region
        $region33: #{tpu_custom_call.1} parent=31 // pred_check
          %p233 = pneg %p51
        $region34: #{tpu_custom_call.1} parent=31 // pred_check_branch
          %235 = sbr.rel (%p233) target = $region36
        $region35: #{tpu_custom_call.1} parent=31 // pred_region
          %s236 = sand.u32 %s41, 1
          %s237 = scalar_lea.sflag [#allocation5], %s236
          %s238 = sand.u32 %s41, 1
          %s239 = smul.addr %s238, 4
          %s240 = scalar_lea.vmem [#allocation4], %s239
          %242 = vsyncadd %s237, 0
          %s243 = smul.addr %s26, 4
          %s244 = scalar_lea.hbm %s0, %s243
          %s246 = sshll.u32 %s244, 4
          %s247 = int_to_ptr.hbm [resolvable:$true] %s246
          %s248 = sshll.u32 %s240, 4
          %s249 = int_to_ptr.vmem [resolvable:$true] %s248
          %251 = dma.hbm_to_vmem [thread:$0]  %s247, 64, %s249, %s237
        $region36: #{tpu_custom_call.1} parent=31 // pred_fallthru
          _
      $region32: #{tpu_custom_call.1} parent=5 // pred_fallthru
        _
      %p252 = scmp.le.s32.totalorder 1, %s19
      %p253 = scmp.lt.s32.totalorder %s19, 3
      %p254 = pnand %p252, %p253
      %p255 = pneg %p254
      // Predicated region
      $region37: #{tpu_custom_call.1} parent=5 // pred_check
        _
      $region38: #{tpu_custom_call.1} parent=5 // pred_check_branch
        %257 = sbr.rel (%p254) target = $region40
      $region39: #{tpu_custom_call.1} parent=5 // pred_region
        %s258 = ssub.s32 %s19, 1
        %s259 = sand.u32 %s44, 1
        %s260 = scalar_lea.sflag [#allocation5], %s259
        %s261 = sand.u32 %s44, 1
        %s262 = smul.addr %s261, 4
        %s263 = scalar_lea.vmem [#allocation4], %s262
        // Predicated region
        $region41: #{tpu_custom_call.1} parent=39 // pred_check
          %p264 = pneg %p57
        $region42: #{tpu_custom_call.1} parent=39 // pred_check_branch
          %266 = sbr.rel (%p264) target = $region44
        $region43: #{tpu_custom_call.1} parent=39 // pred_region
          %268 = dma.done %s260, 64
        $region44: #{tpu_custom_call.1} parent=39 // pred_fallthru
          _
        // Predicated region
        $region45: #{tpu_custom_call.1} parent=39 // pred_check
          %p269 = pneg %p78
        $region46: #{tpu_custom_call.1} parent=39 // pred_check_branch
          %271 = sbr.rel (%p269) target = $region48
        $region47: #{tpu_custom_call.1} parent=39 // pred_region
          %273 = dma.done [#allocation8], 256
        $region48: #{tpu_custom_call.1} parent=39 // pred_fallthru
          _
        // Predicated region
        $region49: #{tpu_custom_call.1} parent=39 // pred_check
          %p274 = pneg %p99
        $region50: #{tpu_custom_call.1} parent=39 // pred_check_branch
          %276 = sbr.rel (%p274) target = $region52
        $region51: #{tpu_custom_call.1} parent=39 // pred_region
          %278 = dma.done [#allocation8], 256
        $region52: #{tpu_custom_call.1} parent=39 // pred_fallthru
          _
        // Predicated region
        $region53: #{tpu_custom_call.1} parent=39 // pred_check
          %p279 = pneg %p120
        $region54: #{tpu_custom_call.1} parent=39 // pred_check_branch
          %281 = sbr.rel (%p279) target = $region56
        $region55: #{tpu_custom_call.1} parent=39 // pred_region
          %283 = dma.done [#allocation11], 256
        $region56: #{tpu_custom_call.1} parent=39 // pred_fallthru
          _
        %s284 = sand.u32 %s44, 1
        %s285 = scalar_lea.sflag [#allocation5], %s284
        %s286 = sand.u32 %s44, 1
        %s287 = smul.addr %s286, 4
        %s288 = scalar_lea.vmem [#allocation4], %s287
        %p289 = pneg %p57
        %p290 = pneg %p54
        %p291 = pneg %p78
        %p292 = pneg %p75
        %p293 = pneg %p99
        %p294 = pneg %p96
        %p295 = pneg %p120
        %p296 = pneg %p117
        %p297 = pneg %p141
        %p298 = pneg %p138
        %p299 = pneg %p169
        %p300 = pneg %p166
        %s301 = sand.u32 %s156, 1
        %s302 = scalar_lea.sflag [#allocation6], %s301
        %s303 = sand.u32 %s156, 1
        %s304 = smul.addr %s303, 8
        %s305 = scalar_lea.vmem [#allocation12], %s304
        %v307 = vld [vmem:[%s263] sm:$0xf]
        %p308 = scmp.eq.s32.totalorder %s29, 0
        // Predicated region
        $region57: #{tpu_custom_call.1} parent=39 // pred_check
          %p309 = pneg %p308
        $region58: #{tpu_custom_call.1} parent=39 // pred_check_branch
          %311 = sbr.rel (%p309) target = $region60
        $region59: #{tpu_custom_call.1} parent=39 // pred_region
          %v312 = vld [vmem:[#allocation9] sm:$0xf]
          %v313 = vld [vmem:[#allocation9 + $0x4] sm:$0xf]
          %v314 = vld [vmem:[#allocation9 + $0x8] sm:$0xf]
          %v315 = vld [vmem:[#allocation9 + $0xc] sm:$0xf]
          %v320 = vunpack.c.l.b16 %v312
          %v321 = vunpack.c.l.b16 %v313
          %v322 = vunpack.c.l.b16 %v314
          %v323 = vunpack.c.l.b16 %v315
          %v324 = vpack.c.b16 %v321, %v320
          %v325 = vpack.c.b16 %v323, %v322
          %vm328 = vcmask 261120
          %v330 = vsel %vm328, %v307, 0
          %332 = vmatpush.bf16.msra.mxu0 0
          %333 = vmatpush.bf16.msra.mxu0 0
          %334 = vmatpush.bf16.msra.mxu0 0
          %335 = vmatpush.bf16.msra.mxu0 0
          %336 = vmatpush.bf16.msra.mxu0 0
          %337 = vmatpush.bf16.msra.mxu0 0
          %338 = vmatpush.bf16.msra.mxu0 %v325
          %339 = vmatpush.bf16.msra.mxu0 %v324
          %340 = vmatmul.bf16.gmra.mxu0 %v330
          %v341 = vpop.f32.mrf.mxu0
          %v342 = vadd.f32 0.0, %v341
          %v343 = vpop.f32.mrf.mxu0
          %344 = vdwg.mxu0
          %v345 = vpack.c.bf16 %v342, %v342
          %vm346 = vcmask 519168
          %347 = vst.msk [vmem:[#allocation2] sm:$0xf] %vm346, %v345
        $region60: #{tpu_custom_call.1} parent=39 // pred_fallthru
          _
        %v348 = vld [vmem:[#allocation7] sm:$0xf]
        %v349 = vld [vmem:[#allocation7 + $0x4] sm:$0xf]
        %v350 = vld [vmem:[#allocation7 + $0x8] sm:$0xf]
        %v351 = vld [vmem:[#allocation7 + $0xc] sm:$0xf]
        %v356 = vunpack.c.l.b16 %v348
        %v357 = vunpack.c.l.b16 %v349
        %v358 = vunpack.c.l.b16 %v350
        %v359 = vunpack.c.l.b16 %v351
        %v360 = vpack.c.b16 %v357, %v356
        %v361 = vpack.c.b16 %v359, %v358
        %vm364 = vcmask 261120
        %v366 = vsel %vm364, %v307, 0
        %368 = vmatpush.bf16.msra.mxu0 0
        %369 = vmatpush.bf16.msra.mxu0 0
        %370 = vmatpush.bf16.msra.mxu0 0
        %371 = vmatpush.bf16.msra.mxu0 0
        %372 = vmatpush.bf16.msra.mxu0 0
        %373 = vmatpush.bf16.msra.mxu0 0
        %374 = vmatpush.bf16.msra.mxu0 %v361
        %375 = vmatpush.bf16.msra.mxu0 %v360
        %376 = vmatmul.bf16.gmra.mxu0 %v366
        %v377 = vpop.f32.mrf.mxu0
        %v378 = vadd.f32 0.0, %v377
        %v379 = vpop.f32.mrf.mxu0
        %380 = vdwg.mxu0
        %v381 = vpack.c.bf16 %v378, %v378
        %v382 = vld [vmem:[#allocation2] sm:$0xf]
        %vm383 = vcmask 31744
        %v385 = vsel %vm383, %v381, 0
        %v388 = vsel %vm383, %v382, 0
        %390 = vmatpush.bf16.xpose.msra.mxu0 0
        %391 = vmatpush.bf16.xpose.msra.mxu0 0
        %392 = vmatpush.bf16.xpose.msra.mxu0 0
        %393 = vmatpush.bf16.xpose.msra.mxu0 0
        %394 = vmatpush.bf16.xpose.msra.mxu0 0
        %395 = vmatpush.bf16.xpose.msra.mxu0 0
        %396 = vmatpush.bf16.xpose.msra.mxu0 0
        %397 = vmatpush.bf16.xpose.msra.mxu0 %v388
        %398 = vmatmul.bf16.gmra.mxu0 %v385
        %v399 = vpop.f32.mrf.mxu0
        %v400 = vadd.f32 0.0, %v399
        %v401 = vpop.f32.mrf.mxu0
        %402 = vdwg.mxu0
        %vm403 = vcmask 64512
        %v404 = vsel %vm403, %v400, -inf
        %405 = vmax.xlane.f32.xlu0 %v404
        %v406 = vpop.xlane.xlu0 %405
        %v407 = vsub.f32 %v400, %v406
        %v408 = vmul.f32 %v407, 1.442695
        %v409 = vpow.pop %v408
        %v410 = vsel %vm403, %v409, 0.0
        %411 = vadd.xlane.f32.xlu0 %v410
        %v412 = vpop.xlane.xlu0 %411
        %v413 = vrcp.pop %v412
        %v414 = vmul.f32 %v409, %v413
        %v415 = vpack.c.bf16 %v414, %v414
        %v417 = vunpack.c.l.b16 %v382
        %v418 = vpack.c.b16 %v417, %v417
        %419 = vrot.lane.b32.xlu0 %v418, 96
        %v420 = vpop.permute.xlu0 %419
        %v422 = vsel %vm403, %v415, 0
        %vm424 = vcmask 1043456
        %v426 = vsel %vm424, %v420, 0
        %428 = vmatpush.bf16.msra.mxu0 0
        %429 = vmatpush.bf16.msra.mxu0 0
        %430 = vmatpush.bf16.msra.mxu0 0
        %431 = vmatpush.bf16.msra.mxu0 0
        %432 = vmatpush.bf16.msra.mxu0 0
        %433 = vmatpush.bf16.msra.mxu0 0
        %434 = vmatpush.bf16.msra.mxu0 0
        %435 = vmatpush.bf16.msra.mxu0 %v426
        %436 = vmatmul.bf16.gmra.mxu0 %v422
        %v437 = vpop.f32.mrf.mxu0
        %v438 = vadd.f32 0.0, %v437
        %v439 = vpop.f32.mrf.mxu0
        %440 = vdwg.mxu0
        %v441 = vpack.c.bf16 %v438, %v438
        %v443 = vunpack.c.l.b16 %v381
        %v444 = vpack.c.b16 %v443, %v443
        %445 = vrot.lane.b32.xlu0 %v444, 124
        %v446 = vpop.permute.xlu0 %445
        %447 = vrot.lane.b32.xlu0 %v418, 124
        %v448 = vpop.permute.xlu0 %447
        %v450 = vsel %vm383, %v446, 0
        %v453 = vsel %vm383, %v448, 0
        %455 = vmatpush.bf16.xpose.msra.mxu0 0
        %456 = vmatpush.bf16.xpose.msra.mxu0 0
        %457 = vmatpush.bf16.xpose.msra.mxu0 0
        %458 = vmatpush.bf16.xpose.msra.mxu0 0
        %459 = vmatpush.bf16.xpose.msra.mxu0 0
        %460 = vmatpush.bf16.xpose.msra.mxu0 0
        %461 = vmatpush.bf16.xpose.msra.mxu0 0
        %462 = vmatpush.bf16.xpose.msra.mxu0 %v453
        %463 = vmatmul.bf16.gmra.mxu0 %v450
        %v464 = vpop.f32.mrf.mxu0
        %v465 = vadd.f32 0.0, %v464
        %v466 = vpop.f32.mrf.mxu0
        %467 = vdwg.mxu0
        %v468 = vsel %vm403, %v465, -inf
        %469 = vmax.xlane.f32.xlu0 %v468
        %v470 = vpop.xlane.xlu0 %469
        %v471 = vsub.f32 %v465, %v470
        %v472 = vmul.f32 %v471, 1.442695
        %v473 = vpow.pop %v472
        %v474 = vsel %vm403, %v473, 0.0
        %475 = vadd.xlane.f32.xlu0 %v474
        %v476 = vpop.xlane.xlu0 %475
        %v477 = vrcp.pop %v476
        %v478 = vmul.f32 %v473, %v477
        %v479 = vpack.c.bf16 %v478, %v478
        %480 = vrot.lane.b32.xlu0 %v418, 92
        %v481 = vpop.permute.xlu0 %480
        %v483 = vsel %vm403, %v479, 0
        %v486 = vsel %vm424, %v481, 0
        %488 = vmatpush.bf16.msra.mxu0 0
        %489 = vmatpush.bf16.msra.mxu0 0
        %490 = vmatpush.bf16.msra.mxu0 0
        %491 = vmatpush.bf16.msra.mxu0 0
        %492 = vmatpush.bf16.msra.mxu0 0
        %493 = vmatpush.bf16.msra.mxu0 0
        %494 = vmatpush.bf16.msra.mxu0 0
        %495 = vmatpush.bf16.msra.mxu0 %v486
        %496 = vmatmul.bf16.gmra.mxu0 %v483
        %v497 = vpop.f32.mrf.mxu0
        %v498 = vadd.f32 0.0, %v497
        %v499 = vpop.f32.mrf.mxu0
        %500 = vdwg.mxu0
        %v501 = vpack.c.bf16 %v498, %v498
        %502 = vrot.lane.b32.xlu0 %v444, 120
        %v503 = vpop.permute.xlu0 %502
        %504 = vrot.lane.b32.xlu0 %v418, 120
        %v505 = vpop.permute.xlu0 %504
        %v507 = vsel %vm383, %v503, 0
        %v510 = vsel %vm383, %v505, 0
        %512 = vmatpush.bf16.xpose.msra.mxu0 0
        %513 = vmatpush.bf16.xpose.msra.mxu0 0
        %514 = vmatpush.bf16.xpose.msra.mxu0 0
        %515 = vmatpush.bf16.xpose.msra.mxu0 0
        %516 = vmatpush.bf16.xpose.msra.mxu0 0
        %517 = vmatpush.bf16.xpose.msra.mxu0 0
        %518 = vmatpush.bf16.xpose.msra.mxu0 0
        %519 = vmatpush.bf16.xpose.msra.mxu0 %v510
        %520 = vmatmul.bf16.gmra.mxu0 %v507
        %v521 = vpop.f32.mrf.mxu0
        %v522 = vadd.f32 0.0, %v521
        %v523 = vpop.f32.mrf.mxu0
        %524 = vdwg.mxu0
        %v525 = vsel %vm403, %v522, -inf
        %526 = vmax.xlane.f32.xlu0 %v525
        %v527 = vpop.xlane.xlu0 %526
        %v528 = vsub.f32 %v522, %v527
        %v529 = vmul.f32 %v528, 1.442695
        %v530 = vpow.pop %v529
        %v531 = vsel %vm403, %v530, 0.0
        %532 = vadd.xlane.f32.xlu0 %v531
        %v533 = vpop.xlane.xlu0 %532
        %v534 = vrcp.pop %v533
        %v535 = vmul.f32 %v530, %v534
        %v536 = vpack.c.bf16 %v535, %v535
        %537 = vrot.lane.b32.xlu0 %v418, 88
        %v538 = vpop.permute.xlu0 %537
        %v540 = vsel %vm403, %v536, 0
        %v543 = vsel %vm424, %v538, 0
        %545 = vmatpush.bf16.msra.mxu0 0
        %546 = vmatpush.bf16.msra.mxu0 0
        %547 = vmatpush.bf16.msra.mxu0 0
        %548 = vmatpush.bf16.msra.mxu0 0
        %549 = vmatpush.bf16.msra.mxu0 0
        %550 = vmatpush.bf16.msra.mxu0 0
        %551 = vmatpush.bf16.msra.mxu0 0
        %552 = vmatpush.bf16.msra.mxu0 %v543
        %553 = vmatmul.bf16.gmra.mxu0 %v540
        %v554 = vpop.f32.mrf.mxu0
        %v555 = vadd.f32 0.0, %v554
        %v556 = vpop.f32.mrf.mxu0
        %557 = vdwg.mxu0
        %v558 = vpack.c.bf16 %v555, %v555
        %559 = vrot.lane.b32.xlu0 %v444, 116
        %v560 = vpop.permute.xlu0 %559
        %561 = vrot.lane.b32.xlu0 %v418, 116
        %v562 = vpop.permute.xlu0 %561
        %v564 = vsel %vm383, %v560, 0
        %v567 = vsel %vm383, %v562, 0
        %569 = vmatpush.bf16.xpose.msra.mxu0 0
        %570 = vmatpush.bf16.xpose.msra.mxu0 0
        %571 = vmatpush.bf16.xpose.msra.mxu0 0
        %572 = vmatpush.bf16.xpose.msra.mxu0 0
        %573 = vmatpush.bf16.xpose.msra.mxu0 0
        %574 = vmatpush.bf16.xpose.msra.mxu0 0
        %575 = vmatpush.bf16.xpose.msra.mxu0 0
        %576 = vmatpush.bf16.xpose.msra.mxu0 %v567
        %577 = vmatmul.bf16.gmra.mxu0 %v564
        %v578 = vpop.f32.mrf.mxu0
        %v579 = vadd.f32 0.0, %v578
        %v580 = vpop.f32.mrf.mxu0
        %581 = vdwg.mxu0
        %v582 = vsel %vm403, %v579, -inf
        %583 = vmax.xlane.f32.xlu0 %v582
        %v584 = vpop.xlane.xlu0 %583
        %v585 = vsub.f32 %v579, %v584
        %v586 = vmul.f32 %v585, 1.442695
        %v587 = vpow.pop %v586
        %v588 = vsel %vm403, %v587, 0.0
        %589 = vadd.xlane.f32.xlu0 %v588
        %v590 = vpop.xlane.xlu0 %589
        %v591 = vrcp.pop %v590
        %v592 = vmul.f32 %v587, %v591
        %v593 = vpack.c.bf16 %v592, %v592
        %594 = vrot.lane.b32.xlu0 %v418, 84
        %v595 = vpop.permute.xlu0 %594
        %v597 = vsel %vm403, %v593, 0
        %v600 = vsel %vm424, %v595, 0
        %602 = vmatpush.bf16.msra.mxu0 0
        %603 = vmatpush.bf16.msra.mxu0 0
        %604 = vmatpush.bf16.msra.mxu0 0
        %605 = vmatpush.bf16.msra.mxu0 0
        %606 = vmatpush.bf16.msra.mxu0 0
        %607 = vmatpush.bf16.msra.mxu0 0
        %608 = vmatpush.bf16.msra.mxu0 0
        %609 = vmatpush.bf16.msra.mxu0 %v600
        %610 = vmatmul.bf16.gmra.mxu0 %v597
        %v611 = vpop.f32.mrf.mxu0
        %v612 = vadd.f32 0.0, %v611
        %v613 = vpop.f32.mrf.mxu0
        %614 = vdwg.mxu0
        %v615 = vpack.c.bf16 %v612, %v612
        %616 = vrot.lane.b32.xlu0 %v444, 112
        %v617 = vpop.permute.xlu0 %616
        %618 = vrot.lane.b32.xlu0 %v418, 112
        %v619 = vpop.permute.xlu0 %618
        %v621 = vsel %vm383, %v617, 0
        %v624 = vsel %vm383, %v619, 0
        %626 = vmatpush.bf16.xpose.msra.mxu0 0
        %627 = vmatpush.bf16.xpose.msra.mxu0 0
        %628 = vmatpush.bf16.xpose.msra.mxu0 0
        %629 = vmatpush.bf16.xpose.msra.mxu0 0
        %630 = vmatpush.bf16.xpose.msra.mxu0 0
        %631 = vmatpush.bf16.xpose.msra.mxu0 0
        %632 = vmatpush.bf16.xpose.msra.mxu0 0
        %633 = vmatpush.bf16.xpose.msra.mxu0 %v624
        %634 = vmatmul.bf16.gmra.mxu0 %v621
        %v635 = vpop.f32.mrf.mxu0
        %v636 = vadd.f32 0.0, %v635
        %v637 = vpop.f32.mrf.mxu0
        %638 = vdwg.mxu0
        %v639 = vsel %vm403, %v636, -inf
        %640 = vmax.xlane.f32.xlu0 %v639
        %v641 = vpop.xlane.xlu0 %640
        %v642 = vsub.f32 %v636, %v641
        %v643 = vmul.f32 %v642, 1.442695
        %v644 = vpow.pop %v643
        %v645 = vsel %vm403, %v644, 0.0
        %646 = vadd.xlane.f32.xlu0 %v645
        %v647 = vpop.xlane.xlu0 %646
        %v648 = vrcp.pop %v647
        %v649 = vmul.f32 %v644, %v648
        %v650 = vpack.c.bf16 %v649, %v649
        %651 = vrot.lane.b32.xlu0 %v418, 80
        %v652 = vpop.permute.xlu0 %651
        %v654 = vsel %vm403, %v650, 0
        %v657 = vsel %vm424, %v652, 0
        %659 = vmatpush.bf16.msra.mxu0 0
        %660 = vmatpush.bf16.msra.mxu0 0
        %661 = vmatpush.bf16.msra.mxu0 0
        %662 = vmatpush.bf16.msra.mxu0 0
        %663 = vmatpush.bf16.msra.mxu0 0
        %664 = vmatpush.bf16.msra.mxu0 0
        %665 = vmatpush.bf16.msra.mxu0 0
        %666 = vmatpush.bf16.msra.mxu0 %v657
        %667 = vmatmul.bf16.gmra.mxu0 %v654
        %v668 = vpop.f32.mrf.mxu0
        %v669 = vadd.f32 0.0, %v668
        %v670 = vpop.f32.mrf.mxu0
        %671 = vdwg.mxu0
        %v672 = vpack.c.bf16 %v669, %v669
        %673 = vrot.lane.b32.xlu0 %v444, 108
        %v674 = vpop.permute.xlu0 %673
        %675 = vrot.lane.b32.xlu0 %v418, 108
        %v676 = vpop.permute.xlu0 %675
        %v678 = vsel %vm383, %v674, 0
        %v681 = vsel %vm383, %v676, 0
        %683 = vmatpush.bf16.xpose.msra.mxu0 0
        %684 = vmatpush.bf16.xpose.msra.mxu0 0
        %685 = vmatpush.bf16.xpose.msra.mxu0 0
        %686 = vmatpush.bf16.xpose.msra.mxu0 0
        %687 = vmatpush.bf16.xpose.msra.mxu0 0
        %688 = vmatpush.bf16.xpose.msra.mxu0 0
        %689 = vmatpush.bf16.xpose.msra.mxu0 0
        %690 = vmatpush.bf16.xpose.msra.mxu0 %v681
        %691 = vmatmul.bf16.gmra.mxu0 %v678
        %v692 = vpop.f32.mrf.mxu0
        %v693 = vadd.f32 0.0, %v692
        %v694 = vpop.f32.mrf.mxu0
        %695 = vdwg.mxu0
        %v696 = vsel %vm403, %v693, -inf
        %697 = vmax.xlane.f32.xlu0 %v696
        %v698 = vpop.xlane.xlu0 %697
        %v699 = vsub.f32 %v693, %v698
        %v700 = vmul.f32 %v699, 1.442695
        %v701 = vpow.pop %v700
        %v702 = vsel %vm403, %v701, 0.0
        %703 = vadd.xlane.f32.xlu0 %v702
        %v704 = vpop.xlane.xlu0 %703
        %v705 = vrcp.pop %v704
        %v706 = vmul.f32 %v701, %v705
        %v707 = vpack.c.bf16 %v706, %v706
        %708 = vrot.lane.b32.xlu0 %v418, 76
        %v709 = vpop.permute.xlu0 %708
        %v711 = vsel %vm403, %v707, 0
        %v714 = vsel %vm424, %v709, 0
        %716 = vmatpush.bf16.msra.mxu0 0
        %717 = vmatpush.bf16.msra.mxu0 0
        %718 = vmatpush.bf16.msra.mxu0 0
        %719 = vmatpush.bf16.msra.mxu0 0
        %720 = vmatpush.bf16.msra.mxu0 0
        %721 = vmatpush.bf16.msra.mxu0 0
        %722 = vmatpush.bf16.msra.mxu0 0
        %723 = vmatpush.bf16.msra.mxu0 %v714
        %724 = vmatmul.bf16.gmra.mxu0 %v711
        %v725 = vpop.f32.mrf.mxu0
        %v726 = vadd.f32 0.0, %v725
        %v727 = vpop.f32.mrf.mxu0
        %728 = vdwg.mxu0
        %v729 = vpack.c.bf16 %v726, %v726
        %730 = vrot.lane.b32.xlu0 %v444, 104
        %v731 = vpop.permute.xlu0 %730
        %732 = vrot.lane.b32.xlu0 %v418, 104
        %v733 = vpop.permute.xlu0 %732
        %v735 = vsel %vm383, %v731, 0
        %v738 = vsel %vm383, %v733, 0
        %740 = vmatpush.bf16.xpose.msra.mxu0 0
        %741 = vmatpush.bf16.xpose.msra.mxu0 0
        %742 = vmatpush.bf16.xpose.msra.mxu0 0
        %743 = vmatpush.bf16.xpose.msra.mxu0 0
        %744 = vmatpush.bf16.xpose.msra.mxu0 0
        %745 = vmatpush.bf16.xpose.msra.mxu0 0
        %746 = vmatpush.bf16.xpose.msra.mxu0 0
        %747 = vmatpush.bf16.xpose.msra.mxu0 %v738
        %748 = vmatmul.bf16.gmra.mxu0 %v735
        %v749 = vpop.f32.mrf.mxu0
        %v750 = vadd.f32 0.0, %v749
        %v751 = vpop.f32.mrf.mxu0
        %752 = vdwg.mxu0
        %v753 = vsel %vm403, %v750, -inf
        %754 = vmax.xlane.f32.xlu0 %v753
        %v755 = vpop.xlane.xlu0 %754
        %v756 = vsub.f32 %v750, %v755
        %v757 = vmul.f32 %v756, 1.442695
        %v758 = vpow.pop %v757
        %v759 = vsel %vm403, %v758, 0.0
        %760 = vadd.xlane.f32.xlu0 %v759
        %v761 = vpop.xlane.xlu0 %760
        %v762 = vrcp.pop %v761
        %v763 = vmul.f32 %v758, %v762
        %v764 = vpack.c.bf16 %v763, %v763
        %765 = vrot.lane.b32.xlu0 %v418, 72
        %v766 = vpop.permute.xlu0 %765
        %v768 = vsel %vm403, %v764, 0
        %v771 = vsel %vm424, %v766, 0
        %773 = vmatpush.bf16.msra.mxu0 0
        %774 = vmatpush.bf16.msra.mxu0 0
        %775 = vmatpush.bf16.msra.mxu0 0
        %776 = vmatpush.bf16.msra.mxu0 0
        %777 = vmatpush.bf16.msra.mxu0 0
        %778 = vmatpush.bf16.msra.mxu0 0
        %779 = vmatpush.bf16.msra.mxu0 0
        %780 = vmatpush.bf16.msra.mxu0 %v771
        %781 = vmatmul.bf16.gmra.mxu0 %v768
        %v782 = vpop.f32.mrf.mxu0
        %v783 = vadd.f32 0.0, %v782
        %v784 = vpop.f32.mrf.mxu0
        %785 = vdwg.mxu0
        %v786 = vpack.c.bf16 %v783, %v783
        %787 = vrot.lane.b32.xlu0 %v444, 100
        %v788 = vpop.permute.xlu0 %787
        %789 = vrot.lane.b32.xlu0 %v418, 100
        %v790 = vpop.permute.xlu0 %789
        %v792 = vsel %vm383, %v788, 0
        %v795 = vsel %vm383, %v790, 0
        %797 = vmatpush.bf16.xpose.msra.mxu0 0
        %798 = vmatpush.bf16.xpose.msra.mxu0 0
        %799 = vmatpush.bf16.xpose.msra.mxu0 0
        %800 = vmatpush.bf16.xpose.msra.mxu0 0
        %801 = vmatpush.bf16.xpose.msra.mxu0 0
        %802 = vmatpush.bf16.xpose.msra.mxu0 0
        %803 = vmatpush.bf16.xpose.msra.mxu0 0
        %804 = vmatpush.bf16.xpose.msra.mxu0 %v795
        %805 = vmatmul.bf16.gmra.mxu0 %v792
        %v806 = vpop.f32.mrf.mxu0
        %v807 = vadd.f32 0.0, %v806
        %v808 = vpop.f32.mrf.mxu0
        %809 = vdwg.mxu0
        %v810 = vsel %vm403, %v807, -inf
        %811 = vmax.xlane.f32.xlu0 %v810
        %v812 = vpop.xlane.xlu0 %811
        %v813 = vsub.f32 %v807, %v812
        %v814 = vmul.f32 %v813, 1.442695
        %v815 = vpow.pop %v814
        %v816 = vsel %vm403, %v815, 0.0
        %817 = vadd.xlane.f32.xlu0 %v816
        %v818 = vpop.xlane.xlu0 %817
        %v819 = vrcp.pop %v818
        %v820 = vmul.f32 %v815, %v819
        %v821 = vpack.c.bf16 %v820, %v820
        %822 = vrot.lane.b32.xlu0 %v418, 68
        %v823 = vpop.permute.xlu0 %822
        %v825 = vsel %vm403, %v821, 0
        %v828 = vsel %vm424, %v823, 0
        %830 = vmatpush.bf16.msra.mxu0 0
        %831 = vmatpush.bf16.msra.mxu0 0
        %832 = vmatpush.bf16.msra.mxu0 0
        %833 = vmatpush.bf16.msra.mxu0 0
        %834 = vmatpush.bf16.msra.mxu0 0
        %835 = vmatpush.bf16.msra.mxu0 0
        %836 = vmatpush.bf16.msra.mxu0 0
        %837 = vmatpush.bf16.msra.mxu0 %v828
        %838 = vmatmul.bf16.gmra.mxu0 %v825
        %v839 = vpop.f32.mrf.mxu0
        %v840 = vadd.f32 0.0, %v839
        %v841 = vpop.f32.mrf.mxu0
        %842 = vdwg.mxu0
        %v843 = vpack.c.bf16 %v840, %v840
        %v845 = vunpack.c.l.b16 %v501
        %v846 = vpack.c.b16 %v845, %v845
        %847 = vrot.lane.b32.xlu0 %v846, 4
        %v848 = vpop.permute.xlu0 %847
        %v850 = vunpack.c.l.b16 %v558
        %v851 = vpack.c.b16 %v850, %v850
        %852 = vrot.lane.b32.xlu0 %v851, 8
        %v853 = vpop.permute.xlu0 %852
        %v855 = vunpack.c.l.b16 %v615
        %v856 = vpack.c.b16 %v855, %v855
        %857 = vrot.lane.b32.xlu0 %v856, 12
        %v858 = vpop.permute.xlu0 %857
        %v860 = vunpack.c.l.b16 %v672
        %v861 = vpack.c.b16 %v860, %v860
        %862 = vrot.lane.b32.xlu0 %v861, 16
        %v863 = vpop.permute.xlu0 %862
        %v865 = vunpack.c.l.b16 %v729
        %v866 = vpack.c.b16 %v865, %v865
        %867 = vrot.lane.b32.xlu0 %v866, 20
        %v868 = vpop.permute.xlu0 %867
        %v870 = vunpack.c.l.b16 %v786
        %v871 = vpack.c.b16 %v870, %v870
        %872 = vrot.lane.b32.xlu0 %v871, 24
        %v873 = vpop.permute.xlu0 %872
        %v875 = vunpack.c.l.b16 %v843
        %v876 = vpack.c.b16 %v875, %v875
        %877 = vrot.lane.b32.xlu0 %v876, 28
        %v878 = vpop.permute.xlu0 %877
        %v881 = vsel %vm383, %v441, %v848
        %v883 = vsel %vm403, %v881, %v853
        %vm884 = vcmask 97280
        %v886 = vsel %vm884, %v883, %v858
        %vm887 = vcmask 130048
        %v889 = vsel %vm887, %v886, %v863
        %vm890 = vcmask 162816
        %v892 = vsel %vm890, %v889, %v868
        %vm893 = vcmask 195584
        %v895 = vsel %vm893, %v892, %v873
        %vm896 = vcmask 228352
        %v898 = vsel %vm896, %v895, %v878
        %vm900 = vcmask 257024
        %901 = vst.msk [vmem:[#allocation3] sm:$0xf] %vm900, %v898
        %v902 = vld [vmem:[#allocation3] sm:$0xf]
        %v903 = vld [vmem:[#allocation10] sm:$0xf]
        %v904 = vld [vmem:[#allocation10 + $0x4] sm:$0xf]
        %v905 = vld [vmem:[#allocation10 + $0x8] sm:$0xf]
        %v906 = vld [vmem:[#allocation10 + $0xc] sm:$0xf]
        %v907 = vld [vmem:[%s4] sm:$0x1]
        %v909 = vperm.slane %v907, 0
        %v915 = vunpack.c.l.b16 %v903
        %v916 = vunpack.c.l.b16 %v904
        %v917 = vunpack.c.l.b16 %v905
        %v918 = vunpack.c.l.b16 %v906
        %v919 = vpack.c.b16 %v916, %v915
        %v920 = vpack.c.b16 %v918, %v917
        %v924 = vsel %vm364, %v902, 0
        %926 = vmatpush.bf16.msra.mxu0 0
        %927 = vmatpush.bf16.msra.mxu0 0
        %928 = vmatpush.bf16.msra.mxu0 0
        %929 = vmatpush.bf16.msra.mxu0 0
        %930 = vmatpush.bf16.msra.mxu0 0
        %931 = vmatpush.bf16.msra.mxu0 0
        %932 = vmatpush.bf16.msra.mxu0 %v920
        %933 = vmatpush.bf16.msra.mxu0 %v919
        %934 = vmatmul.bf16.gmra.mxu0 %v924
        %v935 = vpop.f32.mrf.mxu0
        %v936 = vadd.f32 %v909, %v935
        %v937 = vpop.f32.mrf.mxu0
        %938 = vdwg.mxu0
        %939 = vst.msk [vmem:[%s305] sm:$0xff] %vm364, %v936
        %s940 = sand.u32 %s156, 1
        %s941 = scalar_lea.sflag [#allocation6], %s940
        %s942 = sand.u32 %s156, 1
        %s943 = smul.addr %s942, 8
        %s944 = scalar_lea.vmem [#allocation12], %s943
        // Predicated region
        $region61: #{tpu_custom_call.1} parent=39 // pred_check
          %p945 = pneg %p166
        $region62: #{tpu_custom_call.1} parent=39 // pred_check_branch
          %947 = sbr.rel (%p945) target = $region64
        $region63: #{tpu_custom_call.1} parent=39 // pred_region
          %949 = vsyncadd %s941, 0
          %s950 = sadd.s32 %s29, %s28
          %s951 = smul.addr %s950, 8
          %s952 = scalar_lea.hbm %s5, %s951
          %s954 = sshll.u32 %s944, 4
          %s955 = int_to_ptr.vmem [resolvable:$true] %s954
          %s956 = sshll.u32 %s952, 4
          %s957 = int_to_ptr.hbm [resolvable:$true] %s956
          %959 = dma.vmem_to_hbm [thread:$0]  %s955, 128, %s957, %s941
        $region64: #{tpu_custom_call.1} parent=39 // pred_fallthru
          _
      $region40: #{tpu_custom_call.1} parent=5 // pred_fallthru
        _
      %p960 = scmp.le.s32.totalorder 2, %s19
      // Predicated region
      $region65: #{tpu_custom_call.1} parent=5 // pred_check
        %p961 = pneg %p960
      $region66: #{tpu_custom_call.1} parent=5 // pred_check_branch
        %963 = sbr.rel (%p961) target = $region68
      $region67: #{tpu_custom_call.1} parent=5 // pred_region
        %s964 = ssub.s32 %s19, 2
        // Predicated region
        $region69: #{tpu_custom_call.1} parent=67 // pred_check
          %p965 = pneg %p172
        $region70: #{tpu_custom_call.1} parent=67 // pred_check_branch
          %967 = sbr.rel (%p965) target = $region72
        $region71: #{tpu_custom_call.1} parent=67 // pred_region
          %s968 = sand.u32 %s157, 1
          %s969 = scalar_lea.sflag [#allocation6], %s968
          %s970 = sand.u32 %s157, 1
          %s971 = smul.addr %s970, 8
          %s972 = scalar_lea.vmem [#allocation12], %s971
          %974 = dma.done %s969, 128
        $region72: #{tpu_custom_call.1} parent=67 // pred_fallthru
          _
      $region68: #{tpu_custom_call.1} parent=5 // pred_fallthru
        _
    $region6: #{tpu_custom_call.1} parent=1 // loop_footer
      %s23 = sadd.s32 1, %s19
    $region7: #{tpu_custom_call.1} parent=1 // loop_footer_branch
      %18 = sbr.rel target = $region3
    $region8: #{tpu_custom_call.1} parent=1 // loop_exit
      _
    %975 = vsyncpa [#allocation5], 1
    %s976 = scalar_lea.sflag [#allocation5], 1
    %977 = vsyncpa %s976, 1
    %978 = vsyncpa [#allocation8], 1
    %979 = vsyncpa [#allocation11], 1
    %980 = vsyncpa [#allocation6], 1
    %s981 = scalar_lea.sflag [#allocation6], 1
    %982 = vsyncpa %s981, 1

// kernel: tpu_custom_call.1
$region0: #{tpu_custom_call.1}
  #allocation0 [shape = 'u32[]', space=smem, size = 0x4, offset = 0x4, fixed_abs, tag = 'smem constant byte address 0x4 - core index']
  #allocation1 [shape = 'u32[72,128]{1,0:T(1,128)}', space=vmem, size = 0x9000, scoped, tag = 'internal scratch']
  #allocation2 [shape = 'bf16[8,64]{1,0:T(8,128)(2,1)}', space=vmem, size = 0x800, scoped, tag = 'scratch operand']
  #allocation3 [shape = 'bf16[8,32]{1,0:T(8,128)(2,1)}', space=vmem, size = 0x800, scoped, tag = 'scratch operand']
  %s0 = inlined_call_operand.hbm [shape: bf16[2,8,32], index: 0, kind: input, shape index: {}]
  %s1 = inlined_call_operand.hbm [shape: bf16[32,32], index: 1, kind: input, shape index: {}]
  %s2 = inlined_call_operand.hbm [shape: bf16[32,64], index: 2, kind: input, shape index: {}]
  %s3 = inlined_call_operand.hbm [shape: bf16[32,32], index: 3, kind: input, shape index: {}]
  %s4 = inlined_call_operand.vmem [shape: f32[1,32], index: 4, kind: input, shape index: {}]
  %s5 = inlined_call_operand.hbm [shape: f32[2,8,32], index: 5, kind: output, shape index: {}]
  %s6 = sld [smem:[#allocation0]]
  $region73: #{tpu_custom_call.1} parent=0
    _
  %s8 = ssub.s32 1, %s6
  %s9 = scalar_select 0, %s8, %s6
  $region1: #{tpu_custom_call.1} parent=0
    #allocation4 [shape = 'u8[4096]{0}', space=vmem, size = 0x1000, scoped, tag = 'input window, operand 0']
    #allocation5 [shape = 's32[2]{0}', space=sflag, size = 0x8, scoped, tag = 'scoped memory for tpu_custom_call.1']
    #allocation6 [shape = 's32[2]{0}', space=sflag, size = 0x8, scoped, tag = 'scoped memory for tpu_custom_call.1']
    #allocation7 [shape = 'u8[8192]{0}', space=vmem, size = 0x2000, scoped, tag = 'input window, operand 1, single buffered']
    #allocation8 [shape = 's32[1]{0}', space=sflag, size = 0x4, scoped, tag = 'scoped memory for tpu_custom_call.1']
    #allocation9 [shape = 'u8[8192]{0}', space=vmem, size = 0x2000, scoped, tag = 'input window, operand 2, single buffered']
    #allocation10 [shape = 'u8[8192]{0}', space=vmem, size = 0x2000, scoped, tag = 'input window, operand 3, single buffered']
    #allocation11 [shape = 's32[1]{0}', space=sflag, size = 0x4, scoped, tag = 'scoped memory for tpu_custom_call.1']
    #allocation12 [shape = 'u8[8192]{0}', space=vmem, size = 0x2000, scoped, tag = 'output window, operand 0']
    %10 = vsyncpa [#allocation5], 0
    %s11 = scalar_lea.sflag [#allocation5], 1
    %12 = vsyncpa %s11, 0
    %13 = vsyncpa [#allocation8], 0
    %14 = vsyncpa [#allocation11], 0
    %15 = vsyncpa [#allocation6], 0
    %s16 = scalar_lea.sflag [#allocation6], 1
    %17 = vsyncpa %s16, 0
    loop: start=0, step=1, limit=4
    $region2: #{tpu_custom_call.1} parent=1 // loop_pre_header
      _
    $region3: #{tpu_custom_call.1} parent=1 // loop_header
      %s19 = sphi 0, %s23
      %p20 = scmp.ge.s32.totalorder %s19, 4
      %s26 = sphi 0, %s38
      %s27 = sphi 0, %s34
      %s28 = sphi 0, %s26
      %s29 = sphi 0, %s27
      %s30 = sphi 0, %s28
      %s31 = sphi 0, %s29
      %s41 = sphi 0, %s43
      %s44 = sphi 0, %s41
      %s45 = sphi 0, %s44
      %s61 = sphi 0, %s45
      %s65 = sphi 0, %s65
      %s67 = sphi 0, %s65
      %s68 = sphi 0, %s67
      %s82 = sphi 0, %s68
      %s86 = sphi 0, %s86
      %s88 = sphi 0, %s86
      %s89 = sphi 0, %s88
      %s103 = sphi 0, %s89
      %s107 = sphi 0, %s107
      %s109 = sphi 0, %s107
      %s110 = sphi 0, %s109
      %s124 = sphi 0, %s110
      %s128 = sphi 0, %s128
      %s130 = sphi 0, %s128
      %s131 = sphi 0, %s130
      %s145 = sphi 0, %s131
      %s153 = sphi 0, %s155
      %s156 = sphi 0, %s153
      %s157 = sphi 0, %s156
      %s173 = sphi 0, %s157
    $region4: #{tpu_custom_call.1} parent=1 // loop_header_branch
      %22 = sbr.rel (%p20) target = $region8
    $region5: #{tpu_custom_call.1} parent=1 // loop_body
      %s24 = ssub.s32 %s19, 1
      %s25 = ssub.s32 %s19, 2
      %s32 = sadd.s32 1, %s27
      %p33 = scmp.ge.s32.totalorder %s32, 1
      %s34 = scalar_select %p33, 0, %s32
      %s35 = sadd.s32 1, %s26
      %s36 = scalar_select %p33, %s35, %s26
      %p37 = scmp.ge.s32.totalorder %s36, 2
      %s38 = scalar_select %p37, 0, %s36
      %s39 = ssub.s32 %s26, %s38
      %p40 = scmp.eq.s32.totalorder %s39, 0
      %s42 = sadd.s32 %s41, 1
      %s43 = scalar_select %p40, %s41, %s42
      %p46 = pneg %p40
      %p47 = scmp.eq.s32.totalorder %s19, 1
      %p48 = por %p46, %p47
      %p49 = scmp.ne.s32.totalorder %s41, %s44
      %p50 = scmp.eq.s32.totalorder %s19, 0
      %p51 = por %p49, %p50
      %p52 = scmp.ne.s32.totalorder %s41, %s44
      %p53 = scmp.eq.s32.totalorder %s24, 1
      %p54 = por %p52, %p53
      %p55 = scmp.ne.s32.totalorder %s44, %s45
      %p56 = scmp.eq.s32.totalorder %s24, 0
      %p57 = por %p55, %p56
      %p58 = scmp.ne.s32.totalorder %s44, %s45
      %p59 = scmp.eq.s32.totalorder %s25, 1
      %p60 = por %p58, %p59
      %p62 = scmp.ne.s32.totalorder %s45, %s61
      %p63 = scmp.eq.s32.totalorder %s25, 0
      %p64 = por %p62, %p63
      %s66 = sadd.s32 %s65, 1
      %p69 = scmp.eq.s32.totalorder %s19, 1
      %p70 = scmp.ne.s32.totalorder %s65, %s67
      %p71 = scmp.eq.s32.totalorder %s19, 0
      %p72 = por %p70, %p71
      %p73 = scmp.ne.s32.totalorder %s65, %s67
      %p74 = scmp.eq.s32.totalorder %s24, 1
      %p75 = por %p73, %p74
      %p76 = scmp.ne.s32.totalorder %s67, %s68
      %p77 = scmp.eq.s32.totalorder %s24, 0
      %p78 = por %p76, %p77
      %p79 = scmp.ne.s32.totalorder %s67, %s68
      %p80 = scmp.eq.s32.totalorder %s25, 1
      %p81 = por %p79, %p80
      %p83 = scmp.ne.s32.totalorder %s68, %s82
      %p84 = scmp.eq.s32.totalorder %s25, 0
      %p85 = por %p83, %p84
      %s87 = sadd.s32 %s86, 1
      %p90 = scmp.eq.s32.totalorder %s19, 1
      %p91 = scmp.ne.s32.totalorder %s86, %s88
      %p92 = scmp.eq.s32.totalorder %s19, 0
      %p93 = por %p91, %p92
      %p94 = scmp.ne.s32.totalorder %s86, %s88
      %p95 = scmp.eq.s32.totalorder %s24, 1
      %p96 = por %p94, %p95
      %p97 = scmp.ne.s32.totalorder %s88, %s89
      %p98 = scmp.eq.s32.totalorder %s24, 0
      %p99 = por %p97, %p98
      %p100 = scmp.ne.s32.totalorder %s88, %s89
      %p101 = scmp.eq.s32.totalorder %s25, 1
      %p102 = por %p100, %p101
      %p104 = scmp.ne.s32.totalorder %s89, %s103
      %p105 = scmp.eq.s32.totalorder %s25, 0
      %p106 = por %p104, %p105
      %s108 = sadd.s32 %s107, 1
      %p111 = scmp.eq.s32.totalorder %s19, 1
      %p112 = scmp.ne.s32.totalorder %s107, %s109
      %p113 = scmp.eq.s32.totalorder %s19, 0
      %p114 = por %p112, %p113
      %p115 = scmp.ne.s32.totalorder %s107, %s109
      %p116 = scmp.eq.s32.totalorder %s24, 1
      %p117 = por %p115, %p116
      %p118 = scmp.ne.s32.totalorder %s109, %s110
      %p119 = scmp.eq.s32.totalorder %s24, 0
      %p120 = por %p118, %p119
      %p121 = scmp.ne.s32.totalorder %s109, %s110
      %p122 = scmp.eq.s32.totalorder %s25, 1
      %p123 = por %p121, %p122
      %p125 = scmp.ne.s32.totalorder %s110, %s124
      %p126 = scmp.eq.s32.totalorder %s25, 0
      %p127 = por %p125, %p126
      %s129 = sadd.s32 %s128, 1
      %p132 = scmp.eq.s32.totalorder %s19, 1
      %p133 = scmp.ne.s32.totalorder %s128, %s130
      %p134 = scmp.eq.s32.totalorder %s19, 0
      %p135 = por %p133, %p134
      %p136 = scmp.ne.s32.totalorder %s128, %s130
      %p137 = scmp.eq.s32.totalorder %s24, 1
      %p138 = por %p136, %p137
      %p139 = scmp.ne.s32.totalorder %s130, %s131
      %p140 = scmp.eq.s32.totalorder %s24, 0
      %p141 = por %p139, %p140
      %p142 = scmp.ne.s32.totalorder %s130, %s131
      %p143 = scmp.eq.s32.totalorder %s25, 1
      %p144 = por %p142, %p143
      %p146 = scmp.ne.s32.totalorder %s131, %s145
      %p147 = scmp.eq.s32.totalorder %s25, 0
      %p148 = por %p146, %p147
      %s149 = ssub.s32 %s26, %s38
      %s150 = ssub.s32 %s27, %s34
      %s151 = sor.u32 %s149, %s150
      %p152 = scmp.eq.s32.totalorder %s151, 0
      %s154 = sadd.s32 %s153, 1
      %s155 = scalar_select %p152, %s153, %s154
      %p158 = pneg %p152
      %p159 = scmp.eq.s32.totalorder %s19, 1
      %p160 = por %p158, %p159
      %p161 = scmp.ne.s32.totalorder %s153, %s156
      %p162 = scmp.eq.s32.totalorder %s19, 0
      %p163 = por %p161, %p162
      %p164 = scmp.ne.s32.totalorder %s153, %s156
      %p165 = scmp.eq.s32.totalorder %s24, 1
      %p166 = por %p164, %p165
      %p167 = scmp.ne.s32.totalorder %s156, %s157
      %p168 = scmp.eq.s32.totalorder %s24, 0
      %p169 = por %p167, %p168
      %p170 = scmp.ne.s32.totalorder %s156, %s157
      %p171 = scmp.eq.s32.totalorder %s25, 1
      %p172 = por %p170, %p171
      %p174 = scmp.ne.s32.totalorder %s157, %s173
      %p175 = scmp.eq.s32.totalorder %s25, 0
      %p176 = por %p174, %p175
      %p177 = scmp.le.s32.totalorder 1, %s19
      %p178 = scmp.lt.s32.totalorder %s19, 3
      %p179 = pnand %p177, %p178
      %p180 = pneg %p179
      // Predicated region
      $region9: #{tpu_custom_call.1} parent=5 // pred_check
        _
      $region10: #{tpu_custom_call.1} parent=5 // pred_check_branch
        %182 = sbr.rel (%p179) target = $region12
      $region11: #{tpu_custom_call.1} parent=5 // pred_region
        %s183 = ssub.s32 %s19, 1
        // Predicated region
        $region13: #{tpu_custom_call.1} parent=11 // pred_check
          %p184 = pneg %p78
        $region14: #{tpu_custom_call.1} parent=11 // pred_check_branch
          %186 = sbr.rel (%p184) target = $region16
        $region15: #{tpu_custom_call.1} parent=11 // pred_region
          %188 = vsyncadd [#allocation8], 0
          %s189 = sshll.u32 %s1, 4
          %s190 = int_to_ptr.hbm [resolvable:$true] %s189
          %s191 = sshll.u32 [#allocation7], 4
          %s192 = int_to_ptr.vmem [resolvable:$true] %s191
          %197 = dma.hbm_to_vmem [thread:$0]  %s190, 256, %s192, [#allocation8], 64, 64, 4
        $region16: #{tpu_custom_call.1} parent=11 // pred_fallthru
          _
        // Predicated region
        $region17: #{tpu_custom_call.1} parent=11 // pred_check
          %p198 = pneg %p99
        $region18: #{tpu_custom_call.1} parent=11 // pred_check_branch
          %200 = sbr.rel (%p198) target = $region20
        $region19: #{tpu_custom_call.1} parent=11 // pred_region
          %202 = vsyncadd [#allocation8], 0
          %s203 = sshll.u32 %s2, 4
          %s204 = int_to_ptr.hbm [resolvable:$true] %s203
          %s205 = sshll.u32 [#allocation9], 4
          %s206 = int_to_ptr.vmem [resolvable:$true] %s205
          %211 = dma.hbm_to_vmem [thread:$0]  %s204, 256, %s206, [#allocation8], 64, 64, 4
        $region20: #{tpu_custom_call.1} parent=11 // pred_fallthru
          _
        // Predicated region
        $region21: #{tpu_custom_call.1} parent=11 // pred_check
          %p212 = pneg %p120
        $region22: #{tpu_custom_call.1} parent=11 // pred_check_branch
          %214 = sbr.rel (%p212) target = $region24
        $region23: #{tpu_custom_call.1} parent=11 // pred_region
          %216 = vsyncadd [#allocation11], 0
          %s217 = sshll.u32 %s3, 4
          %s218 = int_to_ptr.hbm [resolvable:$true] %s217
          %s219 = sshll.u32 [#allocation10], 4
          %s220 = int_to_ptr.vmem [resolvable:$true] %s219
          %225 = dma.hbm_to_vmem [thread:$0]  %s218, 256, %s220, [#allocation11], 64, 64, 4
        $region24: #{tpu_custom_call.1} parent=11 // pred_fallthru
          _
        // Predicated region
        $region25: #{tpu_custom_call.1} parent=11 // pred_check
          %p226 = pneg %p141
        $region26: #{tpu_custom_call.1} parent=11 // pred_check_branch
          %228 = sbr.rel (%p226) target = $region28
        $region27: #{tpu_custom_call.1} parent=11 // pred_region
          _
        $region28: #{tpu_custom_call.1} parent=11 // pred_fallthru
          _
      $region12: #{tpu_custom_call.1} parent=5 // pred_fallthru
        _
      %p229 = scmp.lt.s32.totalorder %s19, 2
      // Predicated region
      $region29: #{tpu_custom_call.1} parent=5 // pred_check
        %p230 = pneg %p229
      $region30: #{tpu_custom_call.1} parent=5 // pred_check_branch
        %232 = sbr.rel (%p230) target = $region32
      $region31: #{tpu_custom_call.1} parent=5 // pred_region
        // Predicated region
        $region33: #{tpu_custom_call.1} parent=31 // pred_check
          %p233 = pneg %p51
        $region34: #{tpu_custom_call.1} parent=31 // pred_check_branch
          %235 = sbr.rel (%p233) target = $region36
        $region35: #{tpu_custom_call.1} parent=31 // pred_region
          %s236 = sand.u32 %s41, 1
          %s237 = scalar_lea.sflag [#allocation5], %s236
          %s238 = sand.u32 %s41, 1
          %s239 = smul.addr %s238, 4
          %s240 = scalar_lea.vmem [#allocation4], %s239
          %242 = vsyncadd %s237, 0
          %s243 = smul.addr %s26, 4
          %s244 = scalar_lea.hbm %s0, %s243
          %s246 = sshll.u32 %s244, 4
          %s247 = int_to_ptr.hbm [resolvable:$true] %s246
          %s248 = sshll.u32 %s240, 4
          %s249 = int_to_ptr.vmem [resolvable:$true] %s248
          %251 = dma.hbm_to_vmem [thread:$0]  %s247, 64, %s249, %s237
        $region36: #{tpu_custom_call.1} parent=31 // pred_fallthru
          _
      $region32: #{tpu_custom_call.1} parent=5 // pred_fallthru
        _
      %p252 = scmp.le.s32.totalorder 1, %s19
      %p253 = scmp.lt.s32.totalorder %s19, 3
      %p254 = pnand %p252, %p253
      %p255 = pneg %p254
      // Predicated region
      $region37: #{tpu_custom_call.1} parent=5 // pred_check
        _
      $region38: #{tpu_custom_call.1} parent=5 // pred_check_branch
        %257 = sbr.rel (%p254) target = $region40
      $region39: #{tpu_custom_call.1} parent=5 // pred_region
        %s258 = ssub.s32 %s19, 1
        %s259 = sand.u32 %s44, 1
        %s260 = scalar_lea.sflag [#allocation5], %s259
        %s261 = sand.u32 %s44, 1
        %s262 = smul.addr %s261, 4
        %s263 = scalar_lea.vmem [#allocation4], %s262
        // Predicated region
        $region41: #{tpu_custom_call.1} parent=39 // pred_check
          %p264 = pneg %p57
        $region42: #{tpu_custom_call.1} parent=39 // pred_check_branch
          %266 = sbr.rel (%p264) target = $region44
        $region43: #{tpu_custom_call.1} parent=39 // pred_region
          %268 = dma.done %s260, 64
        $region44: #{tpu_custom_call.1} parent=39 // pred_fallthru
          _
        // Predicated region
        $region45: #{tpu_custom_call.1} parent=39 // pred_check
          %p269 = pneg %p78
        $region46: #{tpu_custom_call.1} parent=39 // pred_check_branch
          %271 = sbr.rel (%p269) target = $region48
        $region47: #{tpu_custom_call.1} parent=39 // pred_region
          %273 = dma.done [#allocation8], 256
        $region48: #{tpu_custom_call.1} parent=39 // pred_fallthru
          _
        // Predicated region
        $region49: #{tpu_custom_call.1} parent=39 // pred_check
          %p274 = pneg %p99
        $region50: #{tpu_custom_call.1} parent=39 // pred_check_branch
          %276 = sbr.rel (%p274) target = $region52
        $region51: #{tpu_custom_call.1} parent=39 // pred_region
          %278 = dma.done [#allocation8], 256
        $region52: #{tpu_custom_call.1} parent=39 // pred_fallthru
          _
        // Predicated region
        $region53: #{tpu_custom_call.1} parent=39 // pred_check
          %p279 = pneg %p120
        $region54: #{tpu_custom_call.1} parent=39 // pred_check_branch
          %281 = sbr.rel (%p279) target = $region56
        $region55: #{tpu_custom_call.1} parent=39 // pred_region
          %283 = dma.done [#allocation11], 256
        $region56: #{tpu_custom_call.1} parent=39 // pred_fallthru
          _
        %s284 = sand.u32 %s44, 1
        %s285 = scalar_lea.sflag [#allocation5], %s284
        %s286 = sand.u32 %s44, 1
        %s287 = smul.addr %s286, 4
        %s288 = scalar_lea.vmem [#allocation4], %s287
        %p289 = pneg %p57
        %p290 = pneg %p54
        %p291 = pneg %p78
        %p292 = pneg %p75
        %p293 = pneg %p99
        %p294 = pneg %p96
        %p295 = pneg %p120
        %p296 = pneg %p117
        %p297 = pneg %p141
        %p298 = pneg %p138
        %p299 = pneg %p169
        %p300 = pneg %p166
        %s301 = sand.u32 %s156, 1
        %s302 = scalar_lea.sflag [#allocation6], %s301
        %s303 = sand.u32 %s156, 1
        %s304 = smul.addr %s303, 8
        %s305 = scalar_lea.vmem [#allocation12], %s304
        %v307 = vld [vmem:[%s263] sm:$0xf]
        %p308 = scmp.eq.s32.totalorder %s29, 0
        // Predicated region
        $region57: #{tpu_custom_call.1} parent=39 // pred_check
          %p309 = pneg %p308
        $region58: #{tpu_custom_call.1} parent=39 // pred_check_branch
          %311 = sbr.rel (%p309) target = $region60
        $region59: #{tpu_custom_call.1} parent=39 // pred_region
          %v312 = vld [vmem:[#allocation9] sm:$0xf]
          %v313 = vld [vmem:[#allocation9 + $0x4] sm:$0xf]
          %v314 = vld [vmem:[#allocation9 + $0x8] sm:$0xf]
          %v315 = vld [vmem:[#allocation9 + $0xc] sm:$0xf]
          %v320 = vunpack.c.l.b16 %v312
          %v321 = vunpack.c.l.b16 %v313
          %v322 = vunpack.c.l.b16 %v314
          %v323 = vunpack.c.l.b16 %v315
          %v324 = vpack.c.b16 %v321, %v320
          %v325 = vpack.c.b16 %v323, %v322
          %vm328 = vcmask 261120
          %v330 = vsel %vm328, %v307, 0
          %332 = vmatpush.bf16.msra.mxu0 0
          %333 = vmatpush.bf16.msra.mxu0 0
          %334 = vmatpush.bf16.msra.mxu0 0
          %335 = vmatpush.bf16.msra.mxu0 0
          %336 = vmatpush.bf16.msra.mxu0 0
          %337 = vmatpush.bf16.msra.mxu0 0
          %338 = vmatpush.bf16.msra.mxu0 %v325
          %339 = vmatpush.bf16.msra.mxu0 %v324
          %340 = vmatmul.bf16.gmra.mxu0 %v330
          %v341 = vpop.f32.mrf.mxu0
          %v342 = vadd.f32 0.0, %v341
          %v343 = vpop.f32.mrf.mxu0
          %344 = vdwg.mxu0
          %v345 = vpack.c.bf16 %v342, %v342
          %vm346 = vcmask 519168
          %347 = vst.msk [vmem:[#allocation2] sm:$0xf] %vm346, %v345
        $region60: #{tpu_custom_call.1} parent=39 // pred_fallthru
          _
        %v348 = vld [vmem:[#allocation7] sm:$0xf]
        %v349 = vld [vmem:[#allocation7 + $0x4] sm:$0xf]
        %v350 = vld [vmem:[#allocation7 + $0x8] sm:$0xf]
        %v351 = vld [vmem:[#allocation7 + $0xc] sm:$0xf]
        %v356 = vunpack.c.l.b16 %v348
        %v357 = vunpack.c.l.b16 %v349
        %v358 = vunpack.c.l.b16 %v350
        %v359 = vunpack.c.l.b16 %v351
        %v360 = vpack.c.b16 %v357, %v356
        %v361 = vpack.c.b16 %v359, %v358
        %vm364 = vcmask 261120
        %v366 = vsel %vm364, %v307, 0
        %368 = vmatpush.bf16.msra.mxu0 0
        %369 = vmatpush.bf16.msra.mxu0 0
        %370 = vmatpush.bf16.msra.mxu0 0
        %371 = vmatpush.bf16.msra.mxu0 0
        %372 = vmatpush.bf16.msra.mxu0 0
        %373 = vmatpush.bf16.msra.mxu0 0
        %374 = vmatpush.bf16.msra.mxu0 %v361
        %375 = vmatpush.bf16.msra.mxu0 %v360
        %376 = vmatmul.bf16.gmra.mxu0 %v366
        %v377 = vpop.f32.mrf.mxu0
        %v378 = vadd.f32 0.0, %v377
        %v379 = vpop.f32.mrf.mxu0
        %380 = vdwg.mxu0
        %v381 = vpack.c.bf16 %v378, %v378
        %v382 = vld [vmem:[#allocation2] sm:$0xf]
        %vm383 = vcmask 31744
        %v385 = vsel %vm383, %v381, 0
        %v388 = vsel %vm383, %v382, 0
        %390 = vmatpush.bf16.xpose.msra.mxu0 0
        %391 = vmatpush.bf16.xpose.msra.mxu0 0
        %392 = vmatpush.bf16.xpose.msra.mxu0 0
        %393 = vmatpush.bf16.xpose.msra.mxu0 0
        %394 = vmatpush.bf16.xpose.msra.mxu0 0
        %395 = vmatpush.bf16.xpose.msra.mxu0 0
        %396 = vmatpush.bf16.xpose.msra.mxu0 0
        %397 = vmatpush.bf16.xpose.msra.mxu0 %v388
        %398 = vmatmul.bf16.gmra.mxu0 %v385
        %v399 = vpop.f32.mrf.mxu0
        %v400 = vadd.f32 0.0, %v399
        %v401 = vpop.f32.mrf.mxu0
        %402 = vdwg.mxu0
        %vm403 = vcmask 64512
        %v404 = vsel %vm403, %v400, -inf
        %405 = vmax.xlane.f32.xlu0 %v404
        %v406 = vpop.xlane.xlu0 %405
        %v407 = vsub.f32 %v400, %v406
        %v408 = vmul.f32 %v407, 1.442695
        %v409 = vpow.pop %v408
        %v410 = vsel %vm403, %v409, 0.0
        %411 = vadd.xlane.f32.xlu0 %v410
        %v412 = vpop.xlane.xlu0 %411
        %v413 = vrcp.pop %v412
        %v414 = vmul.f32 %v409, %v413
        %v415 = vpack.c.bf16 %v414, %v414
        %v417 = vunpack.c.l.b16 %v382
        %v418 = vpack.c.b16 %v417, %v417
        %419 = vrot.lane.b32.xlu0 %v418, 96
        %v420 = vpop.permute.xlu0 %419
        %v422 = vsel %vm403, %v415, 0
        %vm424 = vcmask 1043456
        %v426 = vsel %vm424, %v420, 0
        %428 = vmatpush.bf16.msra.mxu0 0
        %429 = vmatpush.bf16.msra.mxu0 0
        %430 = vmatpush.bf16.msra.mxu0 0
        %431 = vmatpush.bf16.msra.mxu0 0
        %432 = vmatpush.bf16.msra.mxu0 0
        %433 = vmatpush.bf16.msra.mxu0 0
        %434 = vmatpush.bf16.msra.mxu0 0
        %435 = vmatpush.bf16.msra.mxu0 %v426
        %436 = vmatmul.bf16.gmra.mxu0 %v422
        %v437 = vpop.f32.mrf.mxu0
        %v438 = vadd.f32 0.0, %v437
        %v439 = vpop.f32.mrf.mxu0
        %440 = vdwg.mxu0
        %v441 = vpack.c.bf16 %v438, %v438
        %v443 = vunpack.c.l.b16 %v381
        %v444 = vpack.c.b16 %v443, %v443
        %445 = vrot.lane.b32.xlu0 %v444, 124
        %v446 = vpop.permute.xlu0 %445
        %447 = vrot.lane.b32.xlu0 %v418, 124
        %v448 = vpop.permute.xlu0 %447
        %v450 = vsel %vm383, %v446, 0
        %v453 = vsel %vm383, %v448, 0
        %455 = vmatpush.bf16.xpose.msra.mxu0 0
        %456 = vmatpush.bf16.xpose.msra.mxu0 0
        %457 = vmatpush.bf16.xpose.msra.mxu0 0
        %458 = vmatpush.bf16.xpose.msra.mxu0 0
        %459 = vmatpush.bf16.xpose.msra.mxu0 0
        %460 = vmatpush.bf16.xpose.msra.mxu0 0
        %461 = vmatpush.bf16.xpose.msra.mxu0 0
        %462 = vmatpush.bf16.xpose.msra.mxu0 %v453
        %463 = vmatmul.bf16.gmra.mxu0 %v450
        %v464 = vpop.f32.mrf.mxu0
        %v465 = vadd.f32 0.0, %v464
        %v466 = vpop.f32.mrf.mxu0
        %467 = vdwg.mxu0
        %v468 = vsel %vm403, %v465, -inf
        %469 = vmax.xlane.f32.xlu0 %v468
        %v470 = vpop.xlane.xlu0 %469
        %v471 = vsub.f32 %v465, %v470
        %v472 = vmul.f32 %v471, 1.442695
        %v473 = vpow.pop %v472
        %v474 = vsel %vm403, %v473, 0.0
        %475 = vadd.xlane.f32.xlu0 %v474
        %v476 = vpop.xlane.xlu0 %475
        %v477 = vrcp.pop %v476
        %v478 = vmul.f32 %v473, %v477
        %v479 = vpack.c.bf16 %v478, %v478
        %480 = vrot.lane.b32.xlu0 %v418, 92
        %v481 = vpop.permute.xlu0 %480
        %v483 = vsel %vm403, %v479, 0
        %v486 = vsel %vm424, %v481, 0
        %488 = vmatpush.bf16.msra.mxu0 0
        %489 = vmatpush.bf16.msra.mxu0 0
        %490 = vmatpush.bf16.msra.mxu0 0
        %491 = vmatpush.bf16.msra.mxu0 0
        %492 = vmatpush.bf16.msra.mxu0 0
        %493 = vmatpush.bf16.msra.mxu0 0
        %494 = vmatpush.bf16.msra.mxu0 0
        %495 = vmatpush.bf16.msra.mxu0 %v486
        %496 = vmatmul.bf16.gmra.mxu0 %v483
        %v497 = vpop.f32.mrf.mxu0
        %v498 = vadd.f32 0.0, %v497
        %v499 = vpop.f32.mrf.mxu0
        %500 = vdwg.mxu0
        %v501 = vpack.c.bf16 %v498, %v498
        %502 = vrot.lane.b32.xlu0 %v444, 120
        %v503 = vpop.permute.xlu0 %502
        %504 = vrot.lane.b32.xlu0 %v418, 120
        %v505 = vpop.permute.xlu0 %504
        %v507 = vsel %vm383, %v503, 0
        %v510 = vsel %vm383, %v505, 0
        %512 = vmatpush.bf16.xpose.msra.mxu0 0
        %513 = vmatpush.bf16.xpose.msra.mxu0 0
        %514 = vmatpush.bf16.xpose.msra.mxu0 0
        %515 = vmatpush.bf16.xpose.msra.mxu0 0
        %516 = vmatpush.bf16.xpose.msra.mxu0 0
        %517 = vmatpush.bf16.xpose.msra.mxu0 0
        %518 = vmatpush.bf16.xpose.msra.mxu0 0
        %519 = vmatpush.bf16.xpose.msra.mxu0 %v510
        %520 = vmatmul.bf16.gmra.mxu0 %v507
        %v521 = vpop.f32.mrf.mxu0
        %v522 = vadd.f32 0.0, %v521
        %v523 = vpop.f32.mrf.mxu0
        %524 = vdwg.mxu0
        %v525 = vsel %vm403, %v522, -inf
        %526 = vmax.xlane.f32.xlu0 %v525
        %v527 = vpop.xlane.xlu0 %526
        %v528 = vsub.f32 %v522, %v527
        %v529 = vmul.f32 %v528, 1.442695
        %v530 = vpow.pop %v529
        %v531 = vsel %vm403, %v530, 0.0
        %532 = vadd.xlane.f32.xlu0 %v531
        %v533 = vpop.xlane.xlu0 %532
        %v534 = vrcp.pop %v533
        %v535 = vmul.f32 %v530, %v534
        %v536 = vpack.c.bf16 %v535, %v535
        %537 = vrot.lane.b32.xlu0 %v418, 88
        %v538 = vpop.permute.xlu0 %537
        %v540 = vsel %vm403, %v536, 0
        %v543 = vsel %vm424, %v538, 0
        %545 = vmatpush.bf16.msra.mxu0 0
        %546 = vmatpush.bf16.msra.mxu0 0
        %547 = vmatpush.bf16.msra.mxu0 0
        %548 = vmatpush.bf16.msra.mxu0 0
        %549 = vmatpush.bf16.msra.mxu0 0
        %550 = vmatpush.bf16.msra.mxu0 0
        %551 = vmatpush.bf16.msra.mxu0 0
        %552 = vmatpush.bf16.msra.mxu0 %v543
        %553 = vmatmul.bf16.gmra.mxu0 %v540
        %v554 = vpop.f32.mrf.mxu0
        %v555 = vadd.f32 0.0, %v554
        %v556 = vpop.f32.mrf.mxu0
        %557 = vdwg.mxu0
        %v558 = vpack.c.bf16 %v555, %v555
        %559 = vrot.lane.b32.xlu0 %v444, 116
        %v560 = vpop.permute.xlu0 %559
        %561 = vrot.lane.b32.xlu0 %v418, 116
        %v562 = vpop.permute.xlu0 %561
        %v564 = vsel %vm383, %v560, 0
        %v567 = vsel %vm383, %v562, 0
        %569 = vmatpush.bf16.xpose.msra.mxu0 0
        %570 = vmatpush.bf16.xpose.msra.mxu0 0
        %571 = vmatpush.bf16.xpose.msra.mxu0 0
        %572 = vmatpush.bf16.xpose.msra.mxu0 0
        %573 = vmatpush.bf16.xpose.msra.mxu0 0
        %574 = vmatpush.bf16.xpose.msra.mxu0 0
        %575 = vmatpush.bf16.xpose.msra.mxu0 0
        %576 = vmatpush.bf16.xpose.msra.mxu0 %v567
        %577 = vmatmul.bf16.gmra.mxu0 %v564
        %v578 = vpop.f32.mrf.mxu0
        %v579 = vadd.f32 0.0, %v578
        %v580 = vpop.f32.mrf.mxu0
        %581 = vdwg.mxu0
        %v582 = vsel %vm403, %v579, -inf
        %583 = vmax.xlane.f32.xlu0 %v582
        %v584 = vpop.xlane.xlu0 %583
        %v585 = vsub.f32 %v579, %v584
        %v586 = vmul.f32 %v585, 1.442695
        %v587 = vpow.pop %v586
        %v588 = vsel %vm403, %v587, 0.0
        %589 = vadd.xlane.f32.xlu0 %v588
        %v590 = vpop.xlane.xlu0 %589
        %v591 = vrcp.pop %v590
        %v592 = vmul.f32 %v587, %v591
        %v593 = vpack.c.bf16 %v592, %v592
        %594 = vrot.lane.b32.xlu0 %v418, 84
        %v595 = vpop.permute.xlu0 %594
        %v597 = vsel %vm403, %v593, 0
        %v600 = vsel %vm424, %v595, 0
        %602 = vmatpush.bf16.msra.mxu0 0
        %603 = vmatpush.bf16.msra.mxu0 0
        %604 = vmatpush.bf16.msra.mxu0 0
        %605 = vmatpush.bf16.msra.mxu0 0
        %606 = vmatpush.bf16.msra.mxu0 0
        %607 = vmatpush.bf16.msra.mxu0 0
        %608 = vmatpush.bf16.msra.mxu0 0
        %609 = vmatpush.bf16.msra.mxu0 %v600
        %610 = vmatmul.bf16.gmra.mxu0 %v597
        %v611 = vpop.f32.mrf.mxu0
        %v612 = vadd.f32 0.0, %v611
        %v613 = vpop.f32.mrf.mxu0
        %614 = vdwg.mxu0
        %v615 = vpack.c.bf16 %v612, %v612
        %616 = vrot.lane.b32.xlu0 %v444, 112
        %v617 = vpop.permute.xlu0 %616
        %618 = vrot.lane.b32.xlu0 %v418, 112
        %v619 = vpop.permute.xlu0 %618
        %v621 = vsel %vm383, %v617, 0
        %v624 = vsel %vm383, %v619, 0
        %626 = vmatpush.bf16.xpose.msra.mxu0 0
        %627 = vmatpush.bf16.xpose.msra.mxu0 0
        %628 = vmatpush.bf16.xpose.msra.mxu0 0
        %629 = vmatpush.bf16.xpose.msra.mxu0 0
        %630 = vmatpush.bf16.xpose.msra.mxu0 0
        %631 = vmatpush.bf16.xpose.msra.mxu0 0
        %632 = vmatpush.bf16.xpose.msra.mxu0 0
        %633 = vmatpush.bf16.xpose.msra.mxu0 %v624
        %634 = vmatmul.bf16.gmra.mxu0 %v621
        %v635 = vpop.f32.mrf.mxu0
        %v636 = vadd.f32 0.0, %v635
        %v637 = vpop.f32.mrf.mxu0
        %638 = vdwg.mxu0
        %v639 = vsel %vm403, %v636, -inf
        %640 = vmax.xlane.f32.xlu0 %v639
        %v641 = vpop.xlane.xlu0 %640
        %v642 = vsub.f32 %v636, %v641
        %v643 = vmul.f32 %v642, 1.442695
        %v644 = vpow.pop %v643
        %v645 = vsel %vm403, %v644, 0.0
        %646 = vadd.xlane.f32.xlu0 %v645
        %v647 = vpop.xlane.xlu0 %646
        %v648 = vrcp.pop %v647
        %v649 = vmul.f32 %v644, %v648
        %v650 = vpack.c.bf16 %v649, %v649
        %651 = vrot.lane.b32.xlu0 %v418, 80
        %v652 = vpop.permute.xlu0 %651
        %v654 = vsel %vm403, %v650, 0
        %v657 = vsel %vm424, %v652, 0
        %659 = vmatpush.bf16.msra.mxu0 0
        %660 = vmatpush.bf16.msra.mxu0 0
        %661 = vmatpush.bf16.msra.mxu0 0
        %662 = vmatpush.bf16.msra.mxu0 0
        %663 = vmatpush.bf16.msra.mxu0 0
        %664 = vmatpush.bf16.msra.mxu0 0
        %665 = vmatpush.bf16.msra.mxu0 0
        %666 = vmatpush.bf16.msra.mxu0 %v657
        %667 = vmatmul.bf16.gmra.mxu0 %v654
        %v668 = vpop.f32.mrf.mxu0
        %v669 = vadd.f32 0.0, %v668
        %v670 = vpop.f32.mrf.mxu0
        %671 = vdwg.mxu0
        %v672 = vpack.c.bf16 %v669, %v669
        %673 = vrot.lane.b32.xlu0 %v444, 108
        %v674 = vpop.permute.xlu0 %673
        %675 = vrot.lane.b32.xlu0 %v418, 108
        %v676 = vpop.permute.xlu0 %675
        %v678 = vsel %vm383, %v674, 0
        %v681 = vsel %vm383, %v676, 0
        %683 = vmatpush.bf16.xpose.msra.mxu0 0
        %684 = vmatpush.bf16.xpose.msra.mxu0 0
        %685 = vmatpush.bf16.xpose.msra.mxu0 0
        %686 = vmatpush.bf16.xpose.msra.mxu0 0
        %687 = vmatpush.bf16.xpose.msra.mxu0 0
        %688 = vmatpush.bf16.xpose.msra.mxu0 0
        %689 = vmatpush.bf16.xpose.msra.mxu0 0
        %690 = vmatpush.bf16.xpose.msra.mxu0 %v681
        %691 = vmatmul.bf16.gmra.mxu0 %v678
        %v692 = vpop.f32.mrf.mxu0
        %v693 = vadd.f32 0.0, %v692
        %v694 = vpop.f32.mrf.mxu0
        %695 = vdwg.mxu0
        %v696 = vsel %vm403, %v693, -inf
        %697 = vmax.xlane.f32.xlu0 %v696
        %v698 = vpop.xlane.xlu0 %697
        %v699 = vsub.f32 %v693, %v698
        %v700 = vmul.f32 %v699, 1.442695
        %v701 = vpow.pop %v700
        %v702 = vsel %vm403, %v701, 0.0
        %703 = vadd.xlane.f32.xlu0 %v702
        %v704 = vpop.xlane.xlu0 %703
        %v705 = vrcp.pop %v704
        %v706 = vmul.f32 %v701, %v705
        %v707 = vpack.c.bf16 %v706, %v706
        %708 = vrot.lane.b32.xlu0 %v418, 76
        %v709 = vpop.permute.xlu0 %708
        %v711 = vsel %vm403, %v707, 0
        %v714 = vsel %vm424, %v709, 0
        %716 = vmatpush.bf16.msra.mxu0 0
        %717 = vmatpush.bf16.msra.mxu0 0
        %718 = vmatpush.bf16.msra.mxu0 0
        %719 = vmatpush.bf16.msra.mxu0 0
        %720 = vmatpush.bf16.msra.mxu0 0
        %721 = vmatpush.bf16.msra.mxu0 0
        %722 = vmatpush.bf16.msra.mxu0 0
        %723 = vmatpush.bf16.msra.mxu0 %v714
        %724 = vmatmul.bf16.gmra.mxu0 %v711
        %v725 = vpop.f32.mrf.mxu0
        %v726 = vadd.f32 0.0, %v725
        %v727 = vpop.f32.mrf.mxu0
        %728 = vdwg.mxu0
        %v729 = vpack.c.bf16 %v726, %v726
        %730 = vrot.lane.b32.xlu0 %v444, 104
        %v731 = vpop.permute.xlu0 %730
        %732 = vrot.lane.b32.xlu0 %v418, 104
        %v733 = vpop.permute.xlu0 %732
        %v735 = vsel %vm383, %v731, 0
        %v738 = vsel %vm383, %v733, 0
        %740 = vmatpush.bf16.xpose.msra.mxu0 0
        %741 = vmatpush.bf16.xpose.msra.mxu0 0
        %742 = vmatpush.bf16.xpose.msra.mxu0 0
        %743 = vmatpush.bf16.xpose.msra.mxu0 0
        %744 = vmatpush.bf16.xpose.msra.mxu0 0
        %745 = vmatpush.bf16.xpose.msra.mxu0 0
        %746 = vmatpush.bf16.xpose.msra.mxu0 0
        %747 = vmatpush.bf16.xpose.msra.mxu0 %v738
        %748 = vmatmul.bf16.gmra.mxu0 %v735
        %v749 = vpop.f32.mrf.mxu0
        %v750 = vadd.f32 0.0, %v749
        %v751 = vpop.f32.mrf.mxu0
        %752 = vdwg.mxu0
        %v753 = vsel %vm403, %v750, -inf
        %754 = vmax.xlane.f32.xlu0 %v753
        %v755 = vpop.xlane.xlu0 %754
        %v756 = vsub.f32 %v750, %v755
        %v757 = vmul.f32 %v756, 1.442695
        %v758 = vpow.pop %v757
        %v759 = vsel %vm403, %v758, 0.0
        %760 = vadd.xlane.f32.xlu0 %v759
        %v761 = vpop.xlane.xlu0 %760
        %v762 = vrcp.pop %v761
        %v763 = vmul.f32 %v758, %v762
        %v764 = vpack.c.bf16 %v763, %v763
        %765 = vrot.lane.b32.xlu0 %v418, 72
        %v766 = vpop.permute.xlu0 %765
        %v768 = vsel %vm403, %v764, 0
        %v771 = vsel %vm424, %v766, 0
        %773 = vmatpush.bf16.msra.mxu0 0
        %774 = vmatpush.bf16.msra.mxu0 0
        %775 = vmatpush.bf16.msra.mxu0 0
        %776 = vmatpush.bf16.msra.mxu0 0
        %777 = vmatpush.bf16.msra.mxu0 0
        %778 = vmatpush.bf16.msra.mxu0 0
        %779 = vmatpush.bf16.msra.mxu0 0
        %780 = vmatpush.bf16.msra.mxu0 %v771
        %781 = vmatmul.bf16.gmra.mxu0 %v768
        %v782 = vpop.f32.mrf.mxu0
        %v783 = vadd.f32 0.0, %v782
        %v784 = vpop.f32.mrf.mxu0
        %785 = vdwg.mxu0
        %v786 = vpack.c.bf16 %v783, %v783
        %787 = vrot.lane.b32.xlu0 %v444, 100
        %v788 = vpop.permute.xlu0 %787
        %789 = vrot.lane.b32.xlu0 %v418, 100
        %v790 = vpop.permute.xlu0 %789
        %v792 = vsel %vm383, %v788, 0
        %v795 = vsel %vm383, %v790, 0
        %797 = vmatpush.bf16.xpose.msra.mxu0 0
        %798 = vmatpush.bf16.xpose.msra.mxu0 0
        %799 = vmatpush.bf16.xpose.msra.mxu0 0
        %800 = vmatpush.bf16.xpose.msra.mxu0 0
        %801 = vmatpush.bf16.xpose.msra.mxu0 0
        %802 = vmatpush.bf16.xpose.msra.mxu0 0
        %803 = vmatpush.bf16.xpose.msra.mxu0 0
        %804 = vmatpush.bf16.xpose.msra.mxu0 %v795
        %805 = vmatmul.bf16.gmra.mxu0 %v792
        %v806 = vpop.f32.mrf.mxu0
        %v807 = vadd.f32 0.0, %v806
        %v808 = vpop.f32.mrf.mxu0
        %809 = vdwg.mxu0
        %v810 = vsel %vm403, %v807, -inf
        %811 = vmax.xlane.f32.xlu0 %v810
        %v812 = vpop.xlane.xlu0 %811
        %v813 = vsub.f32 %v807, %v812
        %v814 = vmul.f32 %v813, 1.442695
        %v815 = vpow.pop %v814
        %v816 = vsel %vm403, %v815, 0.0
        %817 = vadd.xlane.f32.xlu0 %v816
        %v818 = vpop.xlane.xlu0 %817
        %v819 = vrcp.pop %v818
        %v820 = vmul.f32 %v815, %v819
        %v821 = vpack.c.bf16 %v820, %v820
        %822 = vrot.lane.b32.xlu0 %v418, 68
        %v823 = vpop.permute.xlu0 %822
        %v825 = vsel %vm403, %v821, 0
        %v828 = vsel %vm424, %v823, 0
        %830 = vmatpush.bf16.msra.mxu0 0
        %831 = vmatpush.bf16.msra.mxu0 0
        %832 = vmatpush.bf16.msra.mxu0 0
        %833 = vmatpush.bf16.msra.mxu0 0
        %834 = vmatpush.bf16.msra.mxu0 0
        %835 = vmatpush.bf16.msra.mxu0 0
        %836 = vmatpush.bf16.msra.mxu0 0
        %837 = vmatpush.bf16.msra.mxu0 %v828
        %838 = vmatmul.bf16.gmra.mxu0 %v825
        %v839 = vpop.f32.mrf.mxu0
        %v840 = vadd.f32 0.0, %v839
        %v841 = vpop.f32.mrf.mxu0
        %842 = vdwg.mxu0
        %v843 = vpack.c.bf16 %v840, %v840
        %v845 = vunpack.c.l.b16 %v501
        %v846 = vpack.c.b16 %v845, %v845
        %847 = vrot.lane.b32.xlu0 %v846, 4
        %v848 = vpop.permute.xlu0 %847
        %v850 = vunpack.c.l.b16 %v558
        %v851 = vpack.c.b16 %v850, %v850
        %852 = vrot.lane.b32.xlu0 %v851, 8
        %v853 = vpop.permute.xlu0 %852
        %v855 = vunpack.c.l.b16 %v615
        %v856 = vpack.c.b16 %v855, %v855
        %857 = vrot.lane.b32.xlu0 %v856, 12
        %v858 = vpop.permute.xlu0 %857
        %v860 = vunpack.c.l.b16 %v672
        %v861 = vpack.c.b16 %v860, %v860
        %862 = vrot.lane.b32.xlu0 %v861, 16
        %v863 = vpop.permute.xlu0 %862
        %v865 = vunpack.c.l.b16 %v729
        %v866 = vpack.c.b16 %v865, %v865
        %867 = vrot.lane.b32.xlu0 %v866, 20
        %v868 = vpop.permute.xlu0 %867
        %v870 = vunpack.c.l.b16 %v786
        %v871 = vpack.c.b16 %v870, %v870
        %872 = vrot.lane.b32.xlu0 %v871, 24
        %v873 = vpop.permute.xlu0 %872
        %v875 = vunpack.c.l.b16 %v843
        %v876 = vpack.c.b16 %v875, %v875
        %877 = vrot.lane.b32.xlu0 %v876, 28
        %v878 = vpop.permute.xlu0 %877
        %v881 = vsel %vm383, %v441, %v848
        %v883 = vsel %vm403, %v881, %v853
        %vm884 = vcmask 97280
        %v886 = vsel %vm884, %v883, %v858
        %vm887 = vcmask 130048
        %v889 = vsel %vm887, %v886, %v863
        %vm890 = vcmask 162816
        %v892 = vsel %vm890, %v889, %v868
        %vm893 = vcmask 195584
        %v895 = vsel %vm893, %v892, %v873
        %vm896 = vcmask 228352
        %v898 = vsel %vm896, %v895, %v878
        %vm900 = vcmask 257024
        %901 = vst.msk [vmem:[#allocation3] sm:$0xf] %vm900, %v898
        %v902 = vld [vmem:[#allocation3] sm:$0xf]
        %v903 = vld [vmem:[#allocation10] sm:$0xf]
        %v904 = vld [vmem:[#allocation10 + $0x4] sm:$0xf]
        %v905 = vld [vmem:[#allocation10 + $0x8] sm:$0xf]
        %v906 = vld [vmem:[#allocation10 + $0xc] sm:$0xf]
        %v907 = vld [vmem:[%s4] sm:$0x1]
        %v909 = vperm.slane %v907, 0
        %v915 = vunpack.c.l.b16 %v903
        %v916 = vunpack.c.l.b16 %v904
        %v917 = vunpack.c.l.b16 %v905
        %v918 = vunpack.c.l.b16 %v906
        %v919 = vpack.c.b16 %v916, %v915
        %v920 = vpack.c.b16 %v918, %v917
        %v924 = vsel %vm364, %v902, 0
        %926 = vmatpush.bf16.msra.mxu0 0
        %927 = vmatpush.bf16.msra.mxu0 0
        %928 = vmatpush.bf16.msra.mxu0 0
        %929 = vmatpush.bf16.msra.mxu0 0
        %930 = vmatpush.bf16.msra.mxu0 0
        %931 = vmatpush.bf16.msra.mxu0 0
        %932 = vmatpush.bf16.msra.mxu0 %v920
        %933 = vmatpush.bf16.msra.mxu0 %v919
        %934 = vmatmul.bf16.gmra.mxu0 %v924
        %v935 = vpop.f32.mrf.mxu0
        %v936 = vadd.f32 %v909, %v935
        %v937 = vpop.f32.mrf.mxu0
        %938 = vdwg.mxu0
        %939 = vst.msk [vmem:[%s305] sm:$0xff] %vm364, %v936
        %s940 = sand.u32 %s156, 1
        %s941 = scalar_lea.sflag [#allocation6], %s940
        %s942 = sand.u32 %s156, 1
        %s943 = smul.addr %s942, 8
        %s944 = scalar_lea.vmem [#allocation12], %s943
        // Predicated region
        $region61: #{tpu_custom_call.1} parent=39 // pred_check
          %p945 = pneg %p166
        $region62: #{tpu_custom_call.1} parent=39 // pred_check_branch
          %947 = sbr.rel (%p945) target = $region64
        $region63: #{tpu_custom_call.1} parent=39 // pred_region
          %949 = vsyncadd %s941, 0
          %s950 = sadd.s32 %s29, %s28
          %s951 = smul.addr %s950, 8
          %s952 = scalar_lea.hbm %s5, %s951
          %s954 = sshll.u32 %s944, 4
          %s955 = int_to_ptr.vmem [resolvable:$true] %s954
          %s956 = sshll.u32 %s952, 4
          %s957 = int_to_ptr.hbm [resolvable:$true] %s956
          %959 = dma.vmem_to_hbm [thread:$0]  %s955, 128, %s957, %s941
        $region64: #{tpu_custom_call.1} parent=39 // pred_fallthru
          _
      $region40: #{tpu_custom_call.1} parent=5 // pred_fallthru
        _
      %p960 = scmp.le.s32.totalorder 2, %s19
      // Predicated region
      $region65: #{tpu_custom_call.1} parent=5 // pred_check
        %p961 = pneg %p960
      $region66: #{tpu_custom_call.1} parent=5 // pred_check_branch
        %963 = sbr.rel (%p961) target = $region68
      $region67: #{tpu_custom_call.1} parent=5 // pred_region
        %s964 = ssub.s32 %s19, 2
        // Predicated region
        $region69: #{tpu_custom_call.1} parent=67 // pred_check
          %p965 = pneg %p172
        $region70: #{tpu_custom_call.1} parent=67 // pred_check_branch
          %967 = sbr.rel (%p965) target = $region72
        $region71: #{tpu_custom_call.1} parent=67 // pred_region
          %s968 = sand.u32 %s157, 1
          %s969 = scalar_lea.sflag [#allocation6], %s968
          %s970 = sand.u32 %s157, 1
          %s971 = smul.addr %s970, 8
          %s972 = scalar_lea.vmem [#allocation12], %s971
          %974 = dma.done %s969, 128
        $region72: #{tpu_custom_call.1} parent=67 // pred_fallthru
          _
      $region68: #{tpu_custom_call.1} parent=5 // pred_fallthru
        _
    $region6: #{tpu_custom_call.1} parent=1 // loop_footer
      %s23 = sadd.s32 1, %s19
    $region7: #{tpu_custom_call.1} parent=1 // loop_footer_branch
      %18 = sbr.rel target = $region3
    $region8: #{tpu_custom_call.1} parent=1 // loop_exit
      _
    %975 = vsyncpa [#allocation5], 1
    %s976 = scalar_lea.sflag [#allocation5], 1
    %977 = vsyncpa %s976, 1
    %978 = vsyncpa [#allocation8], 1
    %979 = vsyncpa [#allocation11], 1
    %980 = vsyncpa [#allocation6], 1
    %s981 = scalar_lea.sflag [#allocation6], 1
    %982 = vsyncpa %s981, 1

</llo_original>
